<compile_context>
chip_gen: v7x
topology: tpu7x:2x2x1
jax: 0.10.0
libtpu: 0.0.40
codegen_flags: <defaults>
</compile_context>

<pallas_src>
import jax
import jax.numpy as jnp
import numpy as np
from jax.experimental import pallas as pl
from jax.experimental.pallas import tpu as pltpu

# ---------------- configuration (small, consistent with the module) ----------
NUM_NODES = 32            # N nodes per graph
NUM_EDGES = 64            # directed edges per graph
NUM_FEATURES = 16         # F
HIDDEN = 32               # H (dataset.hidden_units)
NUM_CLASSES = 4           # C
NUM_LAYERS = 2            # L
NUM_RUNS = 4              # R
NUM_GRAPHS = 4            # G graphs batched into one pallas_call
GRAPHS_PER_BLOCK = 2      # GB graphs per grid step -> flattened M = GB*R*N = 256
DROP_P = 0.2
AUGMENTATION = "dropout"  # 'dropout' -> fill 0.0 ; 'rrni' -> fill RANDOM_VALUE
RANDOM_VALUE = 0.1        # deterministic stand-in for random.uniform(0, 0.2)
BN_EPS = 1e-5
CLASS_PAD = 128           # lane-dense logits / output width
NEG_BIG = -1e9            # bias for padded classes (exp underflows to exactly 0)
FILL = RANDOM_VALUE if AUGMENTATION == "rrni" else 0.0


# ---------------- fused Pallas kernel -----------------------------------------
def make_fused_kernel(*, R, N, F, H, L, GB, fill, mlp_offsets, fc_w_off, fc_w_rows):
    """Fully-fused DropGIN forward for one grid step (GB graphs, R runs each).

    Ref order: xr, drop_mask, adj_bd, mlp_slab, fc_slab, out.
    """
    bf16 = jnp.bfloat16
    RN = R * N

    def run_sum(t, g):
        # sum over runs of graph g inside the (GB*R*N, D) run/graph-flattened tensor
        base = g * RN
        acc = t[base:base + N, :]
        for r in range(1, R):
            acc = acc + t[base + r * N: base + (r + 1) * N, :]
        return acc

    def kernel(xr_ref, dm_ref, adj_ref, mlp_ref, fc_ref, out_ref):
        dm = dm_ref[...]                                              # (GB*RN, F) 1.0 where dropped
        h = xr_ref[...] * (1.0 - dm) + jnp.float32(fill) * dm         # masked features, f32
        adj = adj_ref[...]                                            # (GB*RN, GB*RN) bf16, self-loop folded

        # per-graph run-sums of the layer-0 features (readout input #0)
        parts = [[run_sum(h, g)] for g in range(GB)]

        for l in range(L):
            o_w1, din, o_b1, o_w2, o_b2 = mlp_offsets[l]
            w1 = mlp_ref[o_w1:o_w1 + din, :]                          # bf16 (BN1 folded)
            b1 = mlp_ref[o_b1:o_b1 + 1, :].astype(jnp.float32)
            w2 = mlp_ref[o_w2:o_w2 + H, :]                            # bf16 (outer BN folded)
            b2 = mlp_ref[o_b2:o_b2 + 1, :].astype(jnp.float32)

            # GIN aggregation: the (1+eps)*self term rides inside adj's diagonal.
            z = jnp.dot(adj, h.astype(bf16), preferred_element_type=jnp.float32)
            # MLP: Linear -> BN(eval, folded) -> ReLU -> Linear -> BN(eval, folded) -> ReLU
            z = jnp.maximum(
                jnp.dot(z.astype(bf16), w1, preferred_element_type=jnp.float32) + b1, 0.0)
            z = jnp.maximum(
                jnp.dot(z.astype(bf16), w2, preferred_element_type=jnp.float32) + b2, 0.0)
            h = z
            for g in range(GB):
                parts[g].append(run_sum(h, g))

        # fused readout: one lane-dense dot over the stacked fc weights (pre-scaled 1/R)
        ro = jnp.concatenate(
            [jnp.concatenate(parts[g], axis=1) for g in range(GB)], axis=0)   # (GB*N, F+L*H)
        fcw = fc_ref[fc_w_off:fc_w_off + fc_w_rows, :]                        # bf16 (F+L*H, 128)
        fcb = fc_ref[0:1, :].astype(jnp.float32)                              # summed biases (+ -1e9 pads)
        logits = jnp.dot(ro.astype(bf16), fcw, preferred_element_type=jnp.float32) + fcb

        # log_softmax over the padded class lanes (pads contribute exactly 0)
        m = jnp.max(logits, axis=-1, keepdims=True)
        s = logits - m
        lse = jnp.log(jnp.sum(jnp.exp(s), axis=-1, keepdims=True))
        logp = s - lse
        for g in range(GB):
            out_ref[g, :, :] = logp[g * N:(g + 1) * N, :]

    return kernel


# ---------------- wrapper ------------------------------------------------------
def dropgin_forward(x, adj, drop, layer_params, fc_params):
    """Fused Pallas implementation of DropGIN.forward (use_aux_loss=False).

    x:    (G, N, F) per-graph node features
    adj:  (G, N, N) dense adjacency, A[t, s] = #edges s -> t
    drop: (G, R, N) boolean per-run node-drop mask
    """
    G, N, F = x.shape
    R = drop.shape[1]
    L = len(layer_params)
    H = layer_params[0]["w2"].shape[0]
    C = fc_params[0][0].shape[1]
    GB = GRAPHS_PER_BLOCK
    assert G % GB == 0, "NUM_GRAPHS must be divisible by GRAPHS_PER_BLOCK"
    P = G // GB
    RN = R * N
    M = GB * RN
    CP = CLASS_PAD
    f32 = jnp.float32

    # ---- run-replicated features + lane-broadcast drop mask: (P, GB*R*N, F) ----
    xr = jnp.broadcast_to(x[:, None], (G, R, N, F)).reshape(P, M, F).astype(f32)
    dm = jnp.broadcast_to(drop[..., None].astype(f32), (G, R, N, F)).reshape(P, M, F)

    # ---- block-diagonal adjacency with the GIN self term folded in (eps = 0) ----
    # NOTE: (GB*R*N)^2 grows quadratically; for much larger graphs/runs switch to a
    # per-run grid axis and set vmem_limit_bytes explicitly (v7x has only 64 MiB VMEM).
    adj_self = adj.astype(f32) + jnp.eye(N, dtype=f32)[None]                      # (G, N, N)
    a_run = jnp.einsum("rs,gnm->grnsm", jnp.eye(R, dtype=f32), adj_self)
    a_run = a_run.reshape(G, RN, RN)                                              # kron(I_R, A + I)
    a_pair = a_run.reshape(P, GB, RN, RN)
    adj_bd = jnp.einsum("ij,piab->piajb", jnp.eye(GB, dtype=f32), a_pair)
    adj_bd = adj_bd.reshape(P, M, M).astype(jnp.bfloat16)                         # small ints: exact

    # ---- pack per-layer MLP weights (eval BN folded exactly) into one bf16 slab ----
    slab_parts, mlp_offsets, off = [], [], 0

    def pad16(o):
        pad = (-o) % 16
        if pad:
            slab_parts.append(jnp.zeros((pad, H), f32))
        return o + pad

    for lp in layer_params:
        s1 = lp["bn1_g"] * jax.lax.rsqrt(lp["bn1_v"] + BN_EPS)
        t1 = lp["bn1_b"] - lp["bn1_m"] * s1
        so = lp["bno_g"] * jax.lax.rsqrt(lp["bno_v"] + BN_EPS)
        to = lp["bno_b"] - lp["bno_m"] * so
        w1 = lp["w1"] * s1[None, :]
        b1 = lp["b1"] * s1 + t1
        w2 = lp["w2"] * so[None, :]
        b2 = lp["b2"] * so + to
        din = w1.shape[0]

        o_w1 = off; slab_parts.append(w1);                                   off = pad16(off + din)
        o_b1 = off; slab_parts.append(jnp.zeros((16, H), f32).at[0].set(b1)); off += 16
        o_w2 = off; slab_parts.append(w2);                                   off = pad16(off + H)
        o_b2 = off; slab_parts.append(jnp.zeros((16, H), f32).at[0].set(b2)); off += 16
        mlp_offsets.append((o_w1, din, o_b1, o_w2, o_b2))
    mlp_slab = jnp.concatenate(slab_parts, axis=0).astype(jnp.bfloat16)
    mlp_rows = off

    # ---- pack readout: row 0 = summed fc biases (pads -> -1e9), rows 16.. = W/R ----
    fcw_rows = F + L * H
    fc_w_off = 16
    fc_rows = fc_w_off + fcw_rows
    fc_slab = jnp.zeros((fc_rows, CP), f32)
    fc_slab = fc_slab.at[0, :].set(NEG_BIG)
    fc_slab = fc_slab.at[0, :C].set(sum(b for (_, b) in fc_params))
    r0 = fc_w_off
    for (w, _) in fc_params:
        d = w.shape[0]
        fc_slab = fc_slab.at[r0:r0 + d, :C].set(w * (1.0 / R))
        r0 += d
    fc_slab = fc_slab.astype(jnp.bfloat16)

    kernel = make_fused_kernel(R=R, N=N, F=F, H=H, L=L, GB=GB, fill=FILL,
                               mlp_offsets=mlp_offsets,
                               fc_w_off=fc_w_off, fc_w_rows=fcw_rows)

    # ---- advisory cost estimate ----
    flops, din = 0, F
    for _ in range(L):
        flops += 2 * M * M * din + 2 * M * din * H + 2 * M * H * H
        din = H
    flops += 2 * (GB * N) * fcw_rows * CP
    flops *= P
    transcendentals = G * (N * CP + N)
    bytes_accessed = ((xr.size + dm.size) * 4 + adj_bd.size * 2
                      + P * GB * N * CP * 4 + mlp_slab.size * 2 + fc_slab.size * 2)

    out = pl.pallas_call(
        kernel,
        out_shape=jax.ShapeDtypeStruct((P, GB, N, CP), jnp.float32),
        grid=(P,),
        in_specs=[
            pl.BlockSpec((None, M, F), lambda p: (p, 0, 0)),        # xr (per graph-block)
            pl.BlockSpec((None, M, F), lambda p: (p, 0, 0)),        # drop mask
            pl.BlockSpec((None, M, M), lambda p: (p, 0, 0)),        # block-diag adjacency
            pl.BlockSpec((mlp_rows, H), lambda p: (0, 0)),          # shared MLP slab
            pl.BlockSpec((fc_rows, CP), lambda p: (0, 0)),          # shared readout slab
        ],
        out_specs=pl.BlockSpec((None, GB, N, CP), lambda p: (p, 0, 0, 0)),
        compiler_params=pltpu.CompilerParams(dimension_semantics=("parallel",)),
        cost_estimate=pl.CostEstimate(flops=int(flops),
                                      transcendentals=int(transcendentals),
                                      bytes_accessed=int(bytes_accessed)),
    )(xr, dm, adj_bd, mlp_slab, fc_slab)

    log_probs = out.reshape(G, N, CP)[:, :, :C]
    return log_probs, 0


# ---------------- pure-JAX reference (f32, for correctness check) --------------
def reference_forward(x, adj, drop, layer_params, fc_params):
    R = drop.shape[1]
    xr = jnp.where(drop[..., None], jnp.float32(FILL),
                   jnp.broadcast_to(x[:, None], drop.shape + (x.shape[-1],)))
    outs = [xr]
    h = xr
    for lp in layer_params:
        agg = jnp.einsum("gij,grjf->grif", adj, h)
        z = h + agg
        z = z @ lp["w1"] + lp["b1"]
        z = (z - lp["bn1_m"]) * lp["bn1_g"] / jnp.sqrt(lp["bn1_v"] + BN_EPS) + lp["bn1_b"]
        z = jax.nn.relu(z)
        z = z @ lp["w2"] + lp["b2"]
        z = (z - lp["bno_m"]) * lp["bno_g"] / jnp.sqrt(lp["bno_v"] + BN_EPS) + lp["bno_b"]
        z = jax.nn.relu(z)
        h = z
        outs.append(h)
    out = None
    for o, (w, b) in zip(outs, fc_params):
        t = o.mean(axis=1) @ w + b
        out = t if out is None else out + t
    return jax.nn.log_softmax(out, axis=-1)


# ---------------- deterministic parameter construction ------------------------
def init_params(key):
    keys = iter(jax.random.split(key, 64))

    def lin(din, dout):
        w = jax.random.normal(next(keys), (din, dout), jnp.float32) * 0.1
        b = jax.random.normal(next(keys), (dout,), jnp.float32) * 0.05
        return w, b

    def bn(d):
        g = jax.random.uniform(next(keys), (d,), jnp.float32, 0.5, 1.5)
        be = jax.random.normal(next(keys), (d,), jnp.float32) * 0.1
        m = jax.random.normal(next(keys), (d,), jnp.float32) * 0.1
        v = jax.random.uniform(next(keys), (d,), jnp.float32, 0.5, 1.5)
        return g, be, m, v

    layer_params = []
    din = NUM_FEATURES
    for _ in range(NUM_LAYERS):
        w1, b1 = lin(din, HIDDEN)
        g1, be1, m1, v1 = bn(HIDDEN)
        w2, b2 = lin(HIDDEN, HIDDEN)
        go, beo, mo, vo = bn(HIDDEN)
        layer_params.append(dict(w1=w1, b1=b1, bn1_g=g1, bn1_b=be1, bn1_m=m1, bn1_v=v1,
                                 w2=w2, b2=b2, bno_g=go, bno_b=beo, bno_m=mo, bno_v=vo))
        din = HIDDEN

    fc_params = [lin(NUM_FEATURES, NUM_CLASSES)]
    for _ in range(NUM_LAYERS):
        fc_params.append(lin(HIDDEN, NUM_CLASSES))
    return layer_params, fc_params


# ---------------- main ---------------------------------------------------------
if __name__ == "__main__":
    key = jax.random.PRNGKey(0)
    k_x, k_e, k_drop, k_par = jax.random.split(key, 4)

    G = NUM_GRAPHS
    kx = jax.random.split(k_x, G)
    ke = jax.random.split(k_e, G)
    kd = jax.random.split(k_drop, G)
    xs, adjs, drops = [], [], []
    for g in range(G):
        xs.append(jax.random.normal(kx[g], (NUM_NODES, NUM_FEATURES), jnp.float32))
        ks, kt = jax.random.split(ke[g])
        src = jax.random.randint(ks, (NUM_EDGES,), 0, NUM_NODES)
        dst = jax.random.randint(kt, (NUM_EDGES,), 0, NUM_NODES)
        adjs.append(jnp.zeros((NUM_NODES, NUM_NODES), jnp.float32).at[dst, src].add(1.0))
        drops.append(jax.random.bernoulli(kd[g], DROP_P, (NUM_RUNS, NUM_NODES)))
    x = jnp.stack(xs)          # (G, N, F)
    adj = jnp.stack(adjs)      # (G, N, N)
    drop = jnp.stack(drops)    # (G, R, N)

    layer_params, fc_params = init_params(k_par)

    log_probs, aux = jax.jit(dropgin_forward)(x, adj, drop, layer_params, fc_params)
    log_probs = jax.block_until_ready(log_probs)
    ref = jax.block_until_ready(reference_forward(x, adj, drop, layer_params, fc_params))

    assert log_probs.shape == (G, NUM_NODES, NUM_CLASSES)
    if not np.allclose(np.asarray(log_probs), np.asarray(ref), rtol=5e-2, atol=5e-2):
        raise AssertionError("Pallas result does not match JAX reference")

    print("KERNEL_OK")
</pallas_src>

<mosaic_0001>
module attributes {stable_mosaic.version = 11 : i64} {
  func.func @kernel(%arg0: i32, %arg1: memref<1x256x16xf32, #tpu.memory_space<vmem>>, %arg2: memref<1x256x16xf32, #tpu.memory_space<vmem>>, %arg3: memref<1x256x256xbf16, #tpu.memory_space<vmem>>, %arg4: memref<176x32xbf16, #tpu.memory_space<vmem>>, %arg5: memref<96x128xbf16, #tpu.memory_space<vmem>>, %arg6: memref<1x2x32x128xf32, #tpu.memory_space<vmem>>) attributes {dimension_semantics = [#tpu.dimension_semantics<parallel>], iteration_bounds = array<i64: 2>, scalar_prefetch = 0 : i64, scratch_operands = 0 : i64, tpu.core_type = #tpu.core_type<tc>, window_params = [{transform_indices = @transform_0, window_bounds = array<i64: 1, 256, 16>}, {transform_indices = @transform_1, window_bounds = array<i64: 1, 256, 16>}, {transform_indices = @transform_2, window_bounds = array<i64: 1, 256, 256>}, {pipeline_mode = #tpu.pipeline_mode<synchronous>, transform_indices = @transform_3, window_bounds = array<i64: 176, 32>}, {pipeline_mode = #tpu.pipeline_mode<synchronous>, transform_indices = @transform_4, window_bounds = array<i64: 96, 128>}, {transform_indices = @transform_5, window_bounds = array<i64: 1, 2, 32, 128>}]} {
    %c0 = arith.constant 0 : index
    %c0_0 = arith.constant 0 : index
    %c0_1 = arith.constant 0 : index
    %0 = vector.load %arg2[%c0, %c0_0, %c0_1] : memref<1x256x16xf32, #tpu.memory_space<vmem>>, vector<1x256x16xf32>
    %1 = vector.shape_cast %0 : vector<1x256x16xf32> to vector<256x16xf32>
    %c0_2 = arith.constant 0 : index
    %c0_3 = arith.constant 0 : index
    %c0_4 = arith.constant 0 : index
    %2 = vector.load %arg1[%c0_2, %c0_3, %c0_4] : memref<1x256x16xf32, #tpu.memory_space<vmem>>, vector<1x256x16xf32>
    %3 = vector.shape_cast %2 : vector<1x256x16xf32> to vector<256x16xf32>
    %cst = arith.constant 1.000000e+00 : f32
    %4 = vector.broadcast %cst : f32 to vector<256x16xf32>
    %5 = arith.subf %4, %1 : vector<256x16xf32>
    %6 = arith.mulf %3, %5 : vector<256x16xf32>
    %cst_5 = arith.constant 0.000000e+00 : f32
    %7 = vector.broadcast %cst_5 : f32 to vector<256x16xf32>
    %8 = arith.mulf %7, %1 : vector<256x16xf32>
    %9 = arith.addf %6, %8 : vector<256x16xf32>
    %c0_6 = arith.constant 0 : index
    %c0_7 = arith.constant 0 : index
    %c0_8 = arith.constant 0 : index
    %10 = vector.load %arg3[%c0_6, %c0_7, %c0_8] : memref<1x256x256xbf16, #tpu.memory_space<vmem>>, vector<1x256x256xbf16>
    %11 = vector.shape_cast %10 : vector<1x256x256xbf16> to vector<256x256xbf16>
    %12 = vector.extract_strided_slice %9 {offsets = [0, 0], sizes = [32, 16], strides = [1, 1]} : vector<256x16xf32> to vector<32x16xf32>
    %13 = vector.extract_strided_slice %9 {offsets = [32, 0], sizes = [32, 16], strides = [1, 1]} : vector<256x16xf32> to vector<32x16xf32>
    %14 = arith.addf %12, %13 : vector<32x16xf32>
    %15 = vector.extract_strided_slice %9 {offsets = [64, 0], sizes = [32, 16], strides = [1, 1]} : vector<256x16xf32> to vector<32x16xf32>
    %16 = arith.addf %14, %15 : vector<32x16xf32>
    %17 = vector.extract_strided_slice %9 {offsets = [96, 0], sizes = [32, 16], strides = [1, 1]} : vector<256x16xf32> to vector<32x16xf32>
    %18 = arith.addf %16, %17 : vector<32x16xf32>
    %19 = vector.extract_strided_slice %9 {offsets = [128, 0], sizes = [32, 16], strides = [1, 1]} : vector<256x16xf32> to vector<32x16xf32>
    %20 = vector.extract_strided_slice %9 {offsets = [160, 0], sizes = [32, 16], strides = [1, 1]} : vector<256x16xf32> to vector<32x16xf32>
    %21 = arith.addf %19, %20 : vector<32x16xf32>
    %22 = vector.extract_strided_slice %9 {offsets = [192, 0], sizes = [32, 16], strides = [1, 1]} : vector<256x16xf32> to vector<32x16xf32>
    %23 = arith.addf %21, %22 : vector<32x16xf32>
    %24 = vector.extract_strided_slice %9 {offsets = [224, 0], sizes = [32, 16], strides = [1, 1]} : vector<256x16xf32> to vector<32x16xf32>
    %25 = arith.addf %23, %24 : vector<32x16xf32>
    %c0_9 = arith.constant 0 : index
    %c0_10 = arith.constant 0 : index
    %26 = vector.load %arg4[%c0_9, %c0_10] : memref<176x32xbf16, #tpu.memory_space<vmem>>, vector<16x32xbf16>
    %c16 = arith.constant 16 : index
    %c0_11 = arith.constant 0 : index
    %27 = vector.load %arg4[%c16, %c0_11] : memref<176x32xbf16, #tpu.memory_space<vmem>>, vector<1x32xbf16>
    %28 = arith.extf %27 : vector<1x32xbf16> to vector<1x32xf32>
    %c32 = arith.constant 32 : index
    %c0_12 = arith.constant 0 : index
    %29 = vector.load %arg4[%c32, %c0_12] : memref<176x32xbf16, #tpu.memory_space<vmem>>, vector<32x32xbf16>
    %c64 = arith.constant 64 : index
    %c0_13 = arith.constant 0 : index
    %30 = vector.load %arg4[%c64, %c0_13] : memref<176x32xbf16, #tpu.memory_space<vmem>>, vector<1x32xbf16>
    %31 = arith.extf %30 : vector<1x32xbf16> to vector<1x32xf32>
    %32 = arith.truncf %9 : vector<256x16xf32> to vector<256x16xbf16>
    %cst_14 = arith.constant dense<0.000000e+00> : vector<256x16xf32>
    %33 = tpu.matmul %11, %32, %cst_14 {dimension_numbers = #tpu.dot_dimension_numbers<[1], [0], [0], [1], [0, 0, 1, 1], [], []>} : vector<256x256xbf16>, vector<256x16xbf16>, vector<256x16xf32> -> vector<256x16xf32>
    %34 = arith.truncf %33 : vector<256x16xf32> to vector<256x16xbf16>
    %cst_15 = arith.constant dense<0.000000e+00> : vector<256x32xf32>
    %35 = tpu.matmul %34, %26, %cst_15 {dimension_numbers = #tpu.dot_dimension_numbers<[1], [0], [0], [1], [0, 0, 1, 1], [], []>} : vector<256x16xbf16>, vector<16x32xbf16>, vector<256x32xf32> -> vector<256x32xf32>
    %36 = vector.broadcast %28 : vector<1x32xf32> to vector<256x32xf32>
    %37 = arith.addf %35, %36 : vector<256x32xf32>
    %cst_16 = arith.constant 0.000000e+00 : f32
    %38 = vector.broadcast %cst_16 : f32 to vector<256x32xf32>
    %39 = arith.maximumf %37, %38 : vector<256x32xf32>
    %40 = arith.truncf %39 : vector<256x32xf32> to vector<256x32xbf16>
    %cst_17 = arith.constant dense<0.000000e+00> : vector<256x32xf32>
    %41 = tpu.matmul %40, %29, %cst_17 {dimension_numbers = #tpu.dot_dimension_numbers<[1], [0], [0], [1], [0, 0, 1, 1], [], []>} : vector<256x32xbf16>, vector<32x32xbf16>, vector<256x32xf32> -> vector<256x32xf32>
    %42 = vector.broadcast %31 : vector<1x32xf32> to vector<256x32xf32>
    %43 = arith.addf %41, %42 : vector<256x32xf32>
    %cst_18 = arith.constant 0.000000e+00 : f32
    %44 = vector.broadcast %cst_18 : f32 to vector<256x32xf32>
    %45 = arith.maximumf %43, %44 : vector<256x32xf32>
    %46 = vector.extract_strided_slice %45 {offsets = [0, 0], sizes = [32, 32], strides = [1, 1]} : vector<256x32xf32> to vector<32x32xf32>
    %47 = vector.extract_strided_slice %45 {offsets = [32, 0], sizes = [32, 32], strides = [1, 1]} : vector<256x32xf32> to vector<32x32xf32>
    %48 = arith.addf %46, %47 : vector<32x32xf32>
    %49 = vector.extract_strided_slice %45 {offsets = [64, 0], sizes = [32, 32], strides = [1, 1]} : vector<256x32xf32> to vector<32x32xf32>
    %50 = arith.addf %48, %49 : vector<32x32xf32>
    %51 = vector.extract_strided_slice %45 {offsets = [96, 0], sizes = [32, 32], strides = [1, 1]} : vector<256x32xf32> to vector<32x32xf32>
    %52 = arith.addf %50, %51 : vector<32x32xf32>
    %53 = vector.extract_strided_slice %45 {offsets = [128, 0], sizes = [32, 32], strides = [1, 1]} : vector<256x32xf32> to vector<32x32xf32>
    %54 = vector.extract_strided_slice %45 {offsets = [160, 0], sizes = [32, 32], strides = [1, 1]} : vector<256x32xf32> to vector<32x32xf32>
    %55 = arith.addf %53, %54 : vector<32x32xf32>
    %56 = vector.extract_strided_slice %45 {offsets = [192, 0], sizes = [32, 32], strides = [1, 1]} : vector<256x32xf32> to vector<32x32xf32>
    %57 = arith.addf %55, %56 : vector<32x32xf32>
    %58 = vector.extract_strided_slice %45 {offsets = [224, 0], sizes = [32, 32], strides = [1, 1]} : vector<256x32xf32> to vector<32x32xf32>
    %59 = arith.addf %57, %58 : vector<32x32xf32>
    %c80 = arith.constant 80 : index
    %c0_19 = arith.constant 0 : index
    %60 = vector.load %arg4[%c80, %c0_19] : memref<176x32xbf16, #tpu.memory_space<vmem>>, vector<32x32xbf16>
    %c112 = arith.constant 112 : index
    %c0_20 = arith.constant 0 : index
    %61 = vector.load %arg4[%c112, %c0_20] : memref<176x32xbf16, #tpu.memory_space<vmem>>, vector<1x32xbf16>
    %62 = arith.extf %61 : vector<1x32xbf16> to vector<1x32xf32>
    %c128 = arith.constant 128 : index
    %c0_21 = arith.constant 0 : index
    %63 = vector.load %arg4[%c128, %c0_21] : memref<176x32xbf16, #tpu.memory_space<vmem>>, vector<32x32xbf16>
    %c160 = arith.constant 160 : index
    %c0_22 = arith.constant 0 : index
    %64 = vector.load %arg4[%c160, %c0_22] : memref<176x32xbf16, #tpu.memory_space<vmem>>, vector<1x32xbf16>
    %65 = arith.extf %64 : vector<1x32xbf16> to vector<1x32xf32>
    %66 = arith.truncf %45 : vector<256x32xf32> to vector<256x32xbf16>
    %cst_23 = arith.constant dense<0.000000e+00> : vector<256x32xf32>
    %67 = tpu.matmul %11, %66, %cst_23 {dimension_numbers = #tpu.dot_dimension_numbers<[1], [0], [0], [1], [0, 0, 1, 1], [], []>} : vector<256x256xbf16>, vector<256x32xbf16>, vector<256x32xf32> -> vector<256x32xf32>
    %68 = arith.truncf %67 : vector<256x32xf32> to vector<256x32xbf16>
    %cst_24 = arith.constant dense<0.000000e+00> : vector<256x32xf32>
    %69 = tpu.matmul %68, %60, %cst_24 {dimension_numbers = #tpu.dot_dimension_numbers<[1], [0], [0], [1], [0, 0, 1, 1], [], []>} : vector<256x32xbf16>, vector<32x32xbf16>, vector<256x32xf32> -> vector<256x32xf32>
    %70 = vector.broadcast %62 : vector<1x32xf32> to vector<256x32xf32>
    %71 = arith.addf %69, %70 : vector<256x32xf32>
    %cst_25 = arith.constant 0.000000e+00 : f32
    %72 = vector.broadcast %cst_25 : f32 to vector<256x32xf32>
    %73 = arith.maximumf %71, %72 : vector<256x32xf32>
    %74 = arith.truncf %73 : vector<256x32xf32> to vector<256x32xbf16>
    %cst_26 = arith.constant dense<0.000000e+00> : vector<256x32xf32>
    %75 = tpu.matmul %74, %63, %cst_26 {dimension_numbers = #tpu.dot_dimension_numbers<[1], [0], [0], [1], [0, 0, 1, 1], [], []>} : vector<256x32xbf16>, vector<32x32xbf16>, vector<256x32xf32> -> vector<256x32xf32>
    %76 = vector.broadcast %65 : vector<1x32xf32> to vector<256x32xf32>
    %77 = arith.addf %75, %76 : vector<256x32xf32>
    %cst_27 = arith.constant 0.000000e+00 : f32
    %78 = vector.broadcast %cst_27 : f32 to vector<256x32xf32>
    %79 = arith.maximumf %77, %78 : vector<256x32xf32>
    %80 = vector.extract_strided_slice %79 {offsets = [0, 0], sizes = [32, 32], strides = [1, 1]} : vector<256x32xf32> to vector<32x32xf32>
    %81 = vector.extract_strided_slice %79 {offsets = [32, 0], sizes = [32, 32], strides = [1, 1]} : vector<256x32xf32> to vector<32x32xf32>
    %82 = arith.addf %80, %81 : vector<32x32xf32>
    %83 = vector.extract_strided_slice %79 {offsets = [64, 0], sizes = [32, 32], strides = [1, 1]} : vector<256x32xf32> to vector<32x32xf32>
    %84 = arith.addf %82, %83 : vector<32x32xf32>
    %85 = vector.extract_strided_slice %79 {offsets = [96, 0], sizes = [32, 32], strides = [1, 1]} : vector<256x32xf32> to vector<32x32xf32>
    %86 = arith.addf %84, %85 : vector<32x32xf32>
    %87 = vector.extract_strided_slice %79 {offsets = [128, 0], sizes = [32, 32], strides = [1, 1]} : vector<256x32xf32> to vector<32x32xf32>
    %88 = vector.extract_strided_slice %79 {offsets = [160, 0], sizes = [32, 32], strides = [1, 1]} : vector<256x32xf32> to vector<32x32xf32>
    %89 = arith.addf %87, %88 : vector<32x32xf32>
    %90 = vector.extract_strided_slice %79 {offsets = [192, 0], sizes = [32, 32], strides = [1, 1]} : vector<256x32xf32> to vector<32x32xf32>
    %91 = arith.addf %89, %90 : vector<32x32xf32>
    %92 = vector.extract_strided_slice %79 {offsets = [224, 0], sizes = [32, 32], strides = [1, 1]} : vector<256x32xf32> to vector<32x32xf32>
    %93 = arith.addf %91, %92 : vector<32x32xf32>
    %94 = tpu.concatenate %18, %52, %86 in 1 : vector<32x16xf32>, vector<32x32xf32>, vector<32x32xf32> -> vector<32x80xf32>
    %95 = tpu.concatenate %25, %59, %93 in 1 : vector<32x16xf32>, vector<32x32xf32>, vector<32x32xf32> -> vector<32x80xf32>
    %96 = tpu.concatenate %94, %95 in 0 : vector<32x80xf32>, vector<32x80xf32> -> vector<64x80xf32>
    %c16_28 = arith.constant 16 : index
    %c0_29 = arith.constant 0 : index
    %97 = vector.load %arg5[%c16_28, %c0_29] : memref<96x128xbf16, #tpu.memory_space<vmem>>, vector<80x128xbf16>
    %c0_30 = arith.constant 0 : index
    %c0_31 = arith.constant 0 : index
    %98 = vector.load %arg5[%c0_30, %c0_31] : memref<96x128xbf16, #tpu.memory_space<vmem>>, vector<1x128xbf16>
    %99 = arith.extf %98 : vector<1x128xbf16> to vector<1x128xf32>
    %100 = arith.truncf %96 : vector<64x80xf32> to vector<64x80xbf16>
    %cst_32 = arith.constant dense<0.000000e+00> : vector<64x128xf32>
    %101 = tpu.matmul %100, %97, %cst_32 {dimension_numbers = #tpu.dot_dimension_numbers<[1], [0], [0], [1], [0, 0, 1, 1], [], []>} : vector<64x80xbf16>, vector<80x128xbf16>, vector<64x128xf32> -> vector<64x128xf32>
    %102 = vector.broadcast %99 : vector<1x128xf32> to vector<64x128xf32>
    %103 = arith.addf %101, %102 : vector<64x128xf32>
    %cst_33 = arith.constant dense<0xFF800000> : vector<64xf32>
    %104 = vector.multi_reduction <maximumf>, %103, %cst_33 [1] : vector<64x128xf32> to vector<64xf32>
    %105 = vector.shape_cast %104 : vector<64xf32> to vector<64x1xf32>
    %106 = vector.broadcast %105 : vector<64x1xf32> to vector<64x128xf32>
    %107 = arith.subf %103, %106 : vector<64x128xf32>
    %108 = math.exp %107 : vector<64x128xf32>
    %cst_34 = arith.constant dense<0.000000e+00> : vector<64xf32>
    %109 = vector.multi_reduction <add>, %108, %cst_34 [1] : vector<64x128xf32> to vector<64xf32>
    %110 = vector.shape_cast %109 : vector<64xf32> to vector<64x1xf32>
    %111 = math.log %110 : vector<64x1xf32>
    %112 = vector.broadcast %111 : vector<64x1xf32> to vector<64x128xf32>
    %113 = arith.subf %107, %112 : vector<64x128xf32>
    %114 = vector.extract_strided_slice %113 {offsets = [0, 0], sizes = [32, 128], strides = [1, 1]} : vector<64x128xf32> to vector<32x128xf32>
    %c0_35 = arith.constant 0 : index
    %c0_36 = arith.constant 0 : index
    %c0_37 = arith.constant 0 : index
    %c0_38 = arith.constant 0 : index
    %115 = vector.load %arg6[%c0_35, %c0_36, %c0_37, %c0_38] : memref<1x2x32x128xf32, #tpu.memory_space<vmem>>, vector<1x1x32x128xf32>
    %116 = vector.shape_cast %115 : vector<1x1x32x128xf32> to vector<32x128xf32>
    %117 = vector.shape_cast %114 : vector<32x128xf32> to vector<1x1x32x128xf32>
    tpu.vector_store %arg6[%c0_35, %c0_36, %c0_37, %c0_38], %117 {strides = array<i32>} : memref<1x2x32x128xf32, #tpu.memory_space<vmem>>, vector<1x1x32x128xf32>,
    %118 = vector.extract_strided_slice %113 {offsets = [32, 0], sizes = [32, 128], strides = [1, 1]} : vector<64x128xf32> to vector<32x128xf32>
    %c0_39 = arith.constant 0 : index
    %c1 = arith.constant 1 : index
    %c0_40 = arith.constant 0 : index
    %c0_41 = arith.constant 0 : index
    %119 = vector.load %arg6[%c0_39, %c1, %c0_40, %c0_41] : memref<1x2x32x128xf32, #tpu.memory_space<vmem>>, vector<1x1x32x128xf32>
    %120 = vector.shape_cast %119 : vector<1x1x32x128xf32> to vector<32x128xf32>
    %121 = vector.shape_cast %118 : vector<32x128xf32> to vector<1x1x32x128xf32>
    tpu.vector_store %arg6[%c0_39, %c1, %c0_40, %c0_41], %121 {strides = array<i32>} : memref<1x2x32x128xf32, #tpu.memory_space<vmem>>, vector<1x1x32x128xf32>,
    return
  }
  func.func @transform_0(%arg0: i32) -> (i32, i32, i32) {
    %c0_i32 = arith.constant 0 : i32
    %c0_i32_0 = arith.constant 0 : i32
    %c0_i32_1 = arith.constant 0 : i32
    return %arg0, %c0_i32, %c0_i32_0 : i32, i32, i32
  }
  func.func @transform_1(%arg0: i32) -> (i32, i32, i32) {
    %c0_i32 = arith.constant 0 : i32
    %c0_i32_0 = arith.constant 0 : i32
    %c0_i32_1 = arith.constant 0 : i32
    return %arg0, %c0_i32, %c0_i32_0 : i32, i32, i32
  }
  func.func @transform_2(%arg0: i32) -> (i32, i32, i32) {
    %c0_i32 = arith.constant 0 : i32
    %c0_i32_0 = arith.constant 0 : i32
    %c0_i32_1 = arith.constant 0 : i32
    return %arg0, %c0_i32, %c0_i32_0 : i32, i32, i32
  }
  func.func @transform_3(%arg0: i32) -> (i32, i32) {
    %c0_i32 = arith.constant 0 : i32
    %c0_i32_0 = arith.constant 0 : i32
    %c0_i32_1 = arith.constant 0 : i32
    return %c0_i32, %c0_i32_0 : i32, i32
  }
  func.func @transform_4(%arg0: i32) -> (i32, i32) {
    %c0_i32 = arith.constant 0 : i32
    %c0_i32_0 = arith.constant 0 : i32
    %c0_i32_1 = arith.constant 0 : i32
    return %c0_i32, %c0_i32_0 : i32, i32
  }
  func.func @transform_5(%arg0: i32) -> (i32, i32, i32, i32) {
    %c0_i32 = arith.constant 0 : i32
    %c0_i32_0 = arith.constant 0 : i32
    %c0_i32_1 = arith.constant 0 : i32
    %c0_i32_2 = arith.constant 0 : i32
    return %arg0, %c0_i32, %c0_i32_0, %c0_i32_1 : i32, i32, i32, i32
  }
}

</mosaic_0001>

<llo_original>
// kernel: dropgin_forward.1
$region0: #{dropgin_forward.1}
  #allocation0 [shape = 'u32[]', space=smem, size = 0x4, offset = 0x4, fixed_abs, tag = 'smem constant byte address 0x4 - core index']
  #allocation1 [shape = 'u32[144,128]{1,0:T(1,128)}', space=vmem, size = 0x12000, scoped, tag = 'internal scratch']
  %s0 = inlined_call_operand.vmem [shape: f32[2,256,16], index: 0, kind: input, shape index: {}]
  %s1 = inlined_call_operand.vmem [shape: f32[2,256,16], index: 1, kind: input, shape index: {}]
  %s2 = inlined_call_operand.vmem [shape: bf16[2,256,256], index: 2, kind: input, shape index: {}]
  %s3 = inlined_call_operand.vmem [shape: bf16[176,32], index: 3, kind: input, shape index: {}]
  %s4 = inlined_call_operand.vmem [shape: bf16[96,128], index: 4, kind: input, shape index: {}]
  %s5 = inlined_call_operand.vmem [shape: f32[2,2,32,128], index: 5, kind: output, shape index: {}]
  %s6 = sld [smem:[#allocation0]]
  $region53: #{dropgin_forward.1} parent=0
    _
  %s8 = ssub.s32 1, %s6
  %s9 = scalar_select 0, %s8, %s6
  loop: start=0, step=1, limit=4
  $region2: #{dropgin_forward.1} parent=0 // loop_pre_header
    _
  $region3: #{dropgin_forward.1} parent=0 // loop_header
    %s11 = sphi 0, %s15
    %p12 = scmp.ge.s32.totalorder %s11, 4
    %s21 = sphi 0, %s23
    %s24 = sphi 0, %s21
    %s25 = sphi 0, %s24
    %s41 = sphi 0, %s25
    %s47 = sphi 0, %s49
    %s50 = sphi 0, %s47
    %s51 = sphi 0, %s50
    %s67 = sphi 0, %s51
    %s73 = sphi 0, %s75
    %s76 = sphi 0, %s73
    %s77 = sphi 0, %s76
    %s93 = sphi 0, %s77
    %s97 = sphi 0, %s97
    %s99 = sphi 0, %s97
    %s100 = sphi 0, %s99
    %s114 = sphi 0, %s100
    %s118 = sphi 0, %s118
    %s120 = sphi 0, %s118
    %s121 = sphi 0, %s120
    %s135 = sphi 0, %s121
    %s141 = sphi 0, %s143
    %s144 = sphi 0, %s141
    %s145 = sphi 0, %s144
    %s161 = sphi 0, %s145
  $region4: #{dropgin_forward.1} parent=0 // loop_header_branch
    %14 = sbr.rel (%p12) target = $region8
  $region5: #{dropgin_forward.1} parent=0 // loop_body
    %s16 = ssub.s32 %s11, 1
    %s17 = ssub.s32 %s11, 2
    %s18 = sadd.s32 %s11, 1
    %s19 = ssub.s32 %s11, %s18
    %p20 = scmp.eq.s32.totalorder %s19, 0
    %s22 = sadd.s32 %s21, 1
    %s23 = scalar_select %p20, %s21, %s22
    %p26 = pneg %p20
    %p27 = scmp.eq.s32.totalorder %s11, 1
    %p28 = por %p26, %p27
    %p29 = scmp.ne.s32.totalorder %s21, %s24
    %p30 = scmp.eq.s32.totalorder %s11, 0
    %p31 = por %p29, %p30
    %p32 = scmp.ne.s32.totalorder %s21, %s24
    %p33 = scmp.eq.s32.totalorder %s16, 1
    %p34 = por %p32, %p33
    %p35 = scmp.ne.s32.totalorder %s24, %s25
    %p36 = scmp.eq.s32.totalorder %s16, 0
    %p37 = por %p35, %p36
    %p38 = scmp.ne.s32.totalorder %s24, %s25
    %p39 = scmp.eq.s32.totalorder %s17, 1
    %p40 = por %p38, %p39
    %p42 = scmp.ne.s32.totalorder %s25, %s41
    %p43 = scmp.eq.s32.totalorder %s17, 0
    %p44 = por %p42, %p43
    %s45 = ssub.s32 %s11, %s18
    %p46 = scmp.eq.s32.totalorder %s45, 0
    %s48 = sadd.s32 %s47, 1
    %s49 = scalar_select %p46, %s47, %s48
    %p52 = pneg %p46
    %p53 = scmp.eq.s32.totalorder %s11, 1
    %p54 = por %p52, %p53
    %p55 = scmp.ne.s32.totalorder %s47, %s50
    %p56 = scmp.eq.s32.totalorder %s11, 0
    %p57 = por %p55, %p56
    %p58 = scmp.ne.s32.totalorder %s47, %s50
    %p59 = scmp.eq.s32.totalorder %s16, 1
    %p60 = por %p58, %p59
    %p61 = scmp.ne.s32.totalorder %s50, %s51
    %p62 = scmp.eq.s32.totalorder %s16, 0
    %p63 = por %p61, %p62
    %p64 = scmp.ne.s32.totalorder %s50, %s51
    %p65 = scmp.eq.s32.totalorder %s17, 1
    %p66 = por %p64, %p65
    %p68 = scmp.ne.s32.totalorder %s51, %s67
    %p69 = scmp.eq.s32.totalorder %s17, 0
    %p70 = por %p68, %p69
    %s71 = ssub.s32 %s11, %s18
    %p72 = scmp.eq.s32.totalorder %s71, 0
    %s74 = sadd.s32 %s73, 1
    %s75 = scalar_select %p72, %s73, %s74
    %p78 = pneg %p72
    %p79 = scmp.eq.s32.totalorder %s11, 1
    %p80 = por %p78, %p79
    %p81 = scmp.ne.s32.totalorder %s73, %s76
    %p82 = scmp.eq.s32.totalorder %s11, 0
    %p83 = por %p81, %p82
    %p84 = scmp.ne.s32.totalorder %s73, %s76
    %p85 = scmp.eq.s32.totalorder %s16, 1
    %p86 = por %p84, %p85
    %p87 = scmp.ne.s32.totalorder %s76, %s77
    %p88 = scmp.eq.s32.totalorder %s16, 0
    %p89 = por %p87, %p88
    %p90 = scmp.ne.s32.totalorder %s76, %s77
    %p91 = scmp.eq.s32.totalorder %s17, 1
    %p92 = por %p90, %p91
    %p94 = scmp.ne.s32.totalorder %s77, %s93
    %p95 = scmp.eq.s32.totalorder %s17, 0
    %p96 = por %p94, %p95
    %s98 = sadd.s32 %s97, 1
    %p101 = scmp.eq.s32.totalorder %s11, 1
    %p102 = scmp.ne.s32.totalorder %s97, %s99
    %p103 = scmp.eq.s32.totalorder %s11, 0
    %p104 = por %p102, %p103
    %p105 = scmp.ne.s32.totalorder %s97, %s99
    %p106 = scmp.eq.s32.totalorder %s16, 1
    %p107 = por %p105, %p106
    %p108 = scmp.ne.s32.totalorder %s99, %s100
    %p109 = scmp.eq.s32.totalorder %s16, 0
    %p110 = por %p108, %p109
    %p111 = scmp.ne.s32.totalorder %s99, %s100
    %p112 = scmp.eq.s32.totalorder %s17, 1
    %p113 = por %p111, %p112
    %p115 = scmp.ne.s32.totalorder %s100, %s114
    %p116 = scmp.eq.s32.totalorder %s17, 0
    %p117 = por %p115, %p116
    %s119 = sadd.s32 %s118, 1
    %p122 = scmp.eq.s32.totalorder %s11, 1
    %p123 = scmp.ne.s32.totalorder %s118, %s120
    %p124 = scmp.eq.s32.totalorder %s11, 0
    %p125 = por %p123, %p124
    %p126 = scmp.ne.s32.totalorder %s118, %s120
    %p127 = scmp.eq.s32.totalorder %s16, 1
    %p128 = por %p126, %p127
    %p129 = scmp.ne.s32.totalorder %s120, %s121
    %p130 = scmp.eq.s32.totalorder %s16, 0
    %p131 = por %p129, %p130
    %p132 = scmp.ne.s32.totalorder %s120, %s121
    %p133 = scmp.eq.s32.totalorder %s17, 1
    %p134 = por %p132, %p133
    %p136 = scmp.ne.s32.totalorder %s121, %s135
    %p137 = scmp.eq.s32.totalorder %s17, 0
    %p138 = por %p136, %p137
    %s139 = ssub.s32 %s11, %s18
    %p140 = scmp.eq.s32.totalorder %s139, 0
    %s142 = sadd.s32 %s141, 1
    %s143 = scalar_select %p140, %s141, %s142
    %p146 = pneg %p140
    %p147 = scmp.eq.s32.totalorder %s11, 1
    %p148 = por %p146, %p147
    %p149 = scmp.ne.s32.totalorder %s141, %s144
    %p150 = scmp.eq.s32.totalorder %s11, 0
    %p151 = por %p149, %p150
    %p152 = scmp.ne.s32.totalorder %s141, %s144
    %p153 = scmp.eq.s32.totalorder %s16, 1
    %p154 = por %p152, %p153
    %p155 = scmp.ne.s32.totalorder %s144, %s145
    %p156 = scmp.eq.s32.totalorder %s16, 0
    %p157 = por %p155, %p156
    %p158 = scmp.ne.s32.totalorder %s144, %s145
    %p159 = scmp.eq.s32.totalorder %s17, 1
    %p160 = por %p158, %p159
    %p162 = scmp.ne.s32.totalorder %s145, %s161
    %p163 = scmp.eq.s32.totalorder %s17, 0
    %p164 = por %p162, %p163
    %p165 = scmp.le.s32.totalorder 1, %s11
    %p166 = scmp.lt.s32.totalorder %s11, 3
    %p167 = pnand %p165, %p166
    %p168 = pneg %p167
    // Predicated region
    $region9: #{dropgin_forward.1} parent=5 // pred_check
      _
    $region10: #{dropgin_forward.1} parent=5 // pred_check_branch
      %170 = sbr.rel (%p167) target = $region12
    $region11: #{dropgin_forward.1} parent=5 // pred_region
      %s171 = ssub.s32 %s11, 1
      // Predicated region
      $region13: #{dropgin_forward.1} parent=11 // pred_check
        %p172 = pneg %p110
      $region14: #{dropgin_forward.1} parent=11 // pred_check_branch
        %174 = sbr.rel (%p172) target = $region16
      $region15: #{dropgin_forward.1} parent=11 // pred_region
        _
      $region16: #{dropgin_forward.1} parent=11 // pred_fallthru
        _
      // Predicated region
      $region17: #{dropgin_forward.1} parent=11 // pred_check
        %p175 = pneg %p131
      $region18: #{dropgin_forward.1} parent=11 // pred_check_branch
        %177 = sbr.rel (%p175) target = $region20
      $region19: #{dropgin_forward.1} parent=11 // pred_region
        _
      $region20: #{dropgin_forward.1} parent=11 // pred_fallthru
        _
    $region12: #{dropgin_forward.1} parent=5 // pred_fallthru
      _
    %p178 = scmp.lt.s32.totalorder %s11, 2
    // Predicated region
    $region21: #{dropgin_forward.1} parent=5 // pred_check
      %p179 = pneg %p178
    $region22: #{dropgin_forward.1} parent=5 // pred_check_branch
      %181 = sbr.rel (%p179) target = $region24
    $region23: #{dropgin_forward.1} parent=5 // pred_region
      // Predicated region
      $region25: #{dropgin_forward.1} parent=23 // pred_check
        %p182 = pneg %p31
      $region26: #{dropgin_forward.1} parent=23 // pred_check_branch
        %184 = sbr.rel (%p182) target = $region28
      $region27: #{dropgin_forward.1} parent=23 // pred_region
        %p185 = scmp.lt.s32.totalorder %s11, 1
        %s186 = scalar_select %p185, %s11, 1
        %s187 = smul.addr %s186, 32
        %s188 = smul.addr %s187, 8
        %s189 = scalar_lea.vmem %s0, %s188
      $region28: #{dropgin_forward.1} parent=23 // pred_fallthru
        _
      // Predicated region
      $region29: #{dropgin_forward.1} parent=23 // pred_check
        %p190 = pneg %p57
      $region30: #{dropgin_forward.1} parent=23 // pred_check_branch
        %192 = sbr.rel (%p190) target = $region32
      $region31: #{dropgin_forward.1} parent=23 // pred_region
        %p193 = scmp.lt.s32.totalorder %s11, 1
        %s194 = scalar_select %p193, %s11, 1
        %s195 = smul.addr %s194, 32
        %s196 = smul.addr %s195, 8
        %s197 = scalar_lea.vmem %s1, %s196
      $region32: #{dropgin_forward.1} parent=23 // pred_fallthru
        _
      // Predicated region
      $region33: #{dropgin_forward.1} parent=23 // pred_check
        %p198 = pneg %p83
      $region34: #{dropgin_forward.1} parent=23 // pred_check_branch
        %200 = sbr.rel (%p198) target = $region36
      $region35: #{dropgin_forward.1} parent=23 // pred_region
        %p201 = scmp.lt.s32.totalorder %s11, 1
        %s202 = scalar_select %p201, %s11, 1
        %s203 = smul.addr %s202, 64
        %s204 = smul.addr %s203, 4
        %s205 = scalar_lea.vmem %s2, %s204
      $region36: #{dropgin_forward.1} parent=23 // pred_fallthru
        _
    $region24: #{dropgin_forward.1} parent=5 // pred_fallthru
      _
    %p206 = scmp.le.s32.totalorder 1, %s11
    %p207 = scmp.lt.s32.totalorder %s11, 3
    %p208 = pnand %p206, %p207
    %p209 = pneg %p208
    // Predicated region
    $region37: #{dropgin_forward.1} parent=5 // pred_check
      _
    $region38: #{dropgin_forward.1} parent=5 // pred_check_branch
      %211 = sbr.rel (%p208) target = $region40
    $region39: #{dropgin_forward.1} parent=5 // pred_region
      %s212 = ssub.s32 %s11, 1
      %p213 = scmp.lt.s32.totalorder %s16, 1
      %s214 = scalar_select %p213, %s16, 1
      %s215 = smul.addr %s214, 32
      %s216 = smul.addr %s215, 8
      %s217 = scalar_lea.vmem %s0, %s216
      %p218 = pneg %p37
      %p219 = pneg %p34
      %p220 = scmp.lt.s32.totalorder %s16, 1
      %s221 = scalar_select %p220, %s16, 1
      %s222 = smul.addr %s221, 32
      %s223 = smul.addr %s222, 8
      %s224 = scalar_lea.vmem %s1, %s223
      %p225 = pneg %p63
      %p226 = pneg %p60
      %p227 = scmp.lt.s32.totalorder %s16, 1
      %s228 = scalar_select %p227, %s16, 1
      %s229 = smul.addr %s228, 64
      %s230 = smul.addr %s229, 4
      %s231 = scalar_lea.vmem %s2, %s230
      %p232 = pneg %p89
      %p233 = pneg %p86
      %p234 = pneg %p110
      %p235 = pneg %p107
      %p236 = pneg %p131
      %p237 = pneg %p128
      %p238 = pneg %p157
      %p239 = pneg %p154
      %p240 = scmp.lt.s32.totalorder %s16, 1
      %s241 = scalar_select %p240, %s16, 1
      %s242 = smul.addr %s241, 8
      %s243 = smul.addr %s242, 8
      %s244 = scalar_lea.vmem %s5, %s243
      %p245 = scmp.lt.s32.totalorder %s16, 1
      %s246 = scalar_select %p245, %s16, 1
      %s247 = smul.addr %s246, 32
      %s248 = smul.addr %s247, 8
      %s249 = scalar_lea.vmem %s0, %s248
      %p250 = scmp.lt.s32.totalorder %s16, 1
      %s251 = scalar_select %p250, %s16, 1
      %s252 = smul.addr %s251, 32
      %s253 = smul.addr %s252, 8
      %s254 = scalar_lea.vmem %s1, %s253
      %p255 = scmp.lt.s32.totalorder %s16, 1
      %s256 = scalar_select %p255, %s16, 1
      %s257 = smul.addr %s256, 64
      %s258 = smul.addr %s257, 4
      %s259 = scalar_lea.vmem %s2, %s258
      %p260 = scmp.lt.s32.totalorder %s16, 1
      %s261 = scalar_select %p260, %s16, 1
      %s262 = smul.addr %s261, 8
      %s263 = smul.addr %s262, 8
      %s264 = scalar_lea.vmem %s5, %s263
      %v266 = vld [vmem:[%s254] sm:$0xff]
      %v267 = vld [vmem:[%s254 + $0x8] sm:$0xff]
      %v268 = vld [vmem:[%s254 + $0x10] sm:$0xff]
      %v269 = vld [vmem:[%s254 + $0x18] sm:$0xff]
      %v270 = vld [vmem:[%s254 + $0x20] sm:$0xff]
      %v271 = vld [vmem:[%s254 + $0x28] sm:$0xff]
      %v272 = vld [vmem:[%s254 + $0x30] sm:$0xff]
      %v273 = vld [vmem:[%s254 + $0x38] sm:$0xff]
      %v274 = vld [vmem:[%s254 + $0x40] sm:$0xff]
      %v275 = vld [vmem:[%s254 + $0x48] sm:$0xff]
      %v276 = vld [vmem:[%s254 + $0x50] sm:$0xff]
      %v277 = vld [vmem:[%s254 + $0x58] sm:$0xff]
      %v278 = vld [vmem:[%s254 + $0x60] sm:$0xff]
      %v279 = vld [vmem:[%s254 + $0x68] sm:$0xff]
      %v280 = vld [vmem:[%s254 + $0x70] sm:$0xff]
      %v281 = vld [vmem:[%s254 + $0x78] sm:$0xff]
      %v282 = vld [vmem:[%s254 + $0x80] sm:$0xff]
      %v283 = vld [vmem:[%s254 + $0x88] sm:$0xff]
      %v284 = vld [vmem:[%s254 + $0x90] sm:$0xff]
      %v285 = vld [vmem:[%s254 + $0x98] sm:$0xff]
      %v286 = vld [vmem:[%s254 + $0xa0] sm:$0xff]
      %v287 = vld [vmem:[%s254 + $0xa8] sm:$0xff]
      %v288 = vld [vmem:[%s254 + $0xb0] sm:$0xff]
      %v289 = vld [vmem:[%s254 + $0xb8] sm:$0xff]
      %v290 = vld [vmem:[%s254 + $0xc0] sm:$0xff]
      %v291 = vld [vmem:[%s254 + $0xc8] sm:$0xff]
      %v292 = vld [vmem:[%s254 + $0xd0] sm:$0xff]
      %v293 = vld [vmem:[%s254 + $0xd8] sm:$0xff]
      %v294 = vld [vmem:[%s254 + $0xe0] sm:$0xff]
      %v295 = vld [vmem:[%s254 + $0xe8] sm:$0xff]
      %v296 = vld [vmem:[%s254 + $0xf0] sm:$0xff]
      %v297 = vld [vmem:[%s254 + $0xf8] sm:$0xff]
      %v298 = vld [vmem:[%s249] sm:$0xff]
      %v299 = vld [vmem:[%s249 + $0x8] sm:$0xff]
      %v300 = vld [vmem:[%s249 + $0x10] sm:$0xff]
      %v301 = vld [vmem:[%s249 + $0x18] sm:$0xff]
      %v302 = vld [vmem:[%s249 + $0x20] sm:$0xff]
      %v303 = vld [vmem:[%s249 + $0x28] sm:$0xff]
      %v304 = vld [vmem:[%s249 + $0x30] sm:$0xff]
      %v305 = vld [vmem:[%s249 + $0x38] sm:$0xff]
      %v306 = vld [vmem:[%s249 + $0x40] sm:$0xff]
      %v307 = vld [vmem:[%s249 + $0x48] sm:$0xff]
      %v308 = vld [vmem:[%s249 + $0x50] sm:$0xff]
      %v309 = vld [vmem:[%s249 + $0x58] sm:$0xff]
      %v310 = vld [vmem:[%s249 + $0x60] sm:$0xff]
      %v311 = vld [vmem:[%s249 + $0x68] sm:$0xff]
      %v312 = vld [vmem:[%s249 + $0x70] sm:$0xff]
      %v313 = vld [vmem:[%s249 + $0x78] sm:$0xff]
      %v314 = vld [vmem:[%s249 + $0x80] sm:$0xff]
      %v315 = vld [vmem:[%s249 + $0x88] sm:$0xff]
      %v316 = vld [vmem:[%s249 + $0x90] sm:$0xff]
      %v317 = vld [vmem:[%s249 + $0x98] sm:$0xff]
      %v318 = vld [vmem:[%s249 + $0xa0] sm:$0xff]
      %v319 = vld [vmem:[%s249 + $0xa8] sm:$0xff]
      %v320 = vld [vmem:[%s249 + $0xb0] sm:$0xff]
      %v321 = vld [vmem:[%s249 + $0xb8] sm:$0xff]
      %v322 = vld [vmem:[%s249 + $0xc0] sm:$0xff]
      %v323 = vld [vmem:[%s249 + $0xc8] sm:$0xff]
      %v324 = vld [vmem:[%s249 + $0xd0] sm:$0xff]
      %v325 = vld [vmem:[%s249 + $0xd8] sm:$0xff]
      %v326 = vld [vmem:[%s249 + $0xe0] sm:$0xff]
      %v327 = vld [vmem:[%s249 + $0xe8] sm:$0xff]
      %v328 = vld [vmem:[%s249 + $0xf0] sm:$0xff]
      %v329 = vld [vmem:[%s249 + $0xf8] sm:$0xff]
      %v330 = vsub.f32 1.0, %v266
      %v331 = vsub.f32 1.0, %v267
      %v332 = vsub.f32 1.0, %v268
      %v333 = vsub.f32 1.0, %v269
      %v334 = vsub.f32 1.0, %v270
      %v335 = vsub.f32 1.0, %v271
      %v336 = vsub.f32 1.0, %v272
      %v337 = vsub.f32 1.0, %v273
      %v338 = vsub.f32 1.0, %v274
      %v339 = vsub.f32 1.0, %v275
      %v340 = vsub.f32 1.0, %v276
      %v341 = vsub.f32 1.0, %v277
      %v342 = vsub.f32 1.0, %v278
      %v343 = vsub.f32 1.0, %v279
      %v344 = vsub.f32 1.0, %v280
      %v345 = vsub.f32 1.0, %v281
      %v346 = vsub.f32 1.0, %v282
      %v347 = vsub.f32 1.0, %v283
      %v348 = vsub.f32 1.0, %v284
      %v349 = vsub.f32 1.0, %v285
      %v350 = vsub.f32 1.0, %v286
      %v351 = vsub.f32 1.0, %v287
      %v352 = vsub.f32 1.0, %v288
      %v353 = vsub.f32 1.0, %v289
      %v354 = vsub.f32 1.0, %v290
      %v355 = vsub.f32 1.0, %v291
      %v356 = vsub.f32 1.0, %v292
      %v357 = vsub.f32 1.0, %v293
      %v358 = vsub.f32 1.0, %v294
      %v359 = vsub.f32 1.0, %v295
      %v360 = vsub.f32 1.0, %v296
      %v361 = vsub.f32 1.0, %v297
      %v362 = vmul.f32 %v298, %v330
      %v363 = vmul.f32 %v299, %v331
      %v364 = vmul.f32 %v300, %v332
      %v365 = vmul.f32 %v301, %v333
      %v366 = vmul.f32 %v302, %v334
      %v367 = vmul.f32 %v303, %v335
      %v368 = vmul.f32 %v304, %v336
      %v369 = vmul.f32 %v305, %v337
      %v370 = vmul.f32 %v306, %v338
      %v371 = vmul.f32 %v307, %v339
      %v372 = vmul.f32 %v308, %v340
      %v373 = vmul.f32 %v309, %v341
      %v374 = vmul.f32 %v310, %v342
      %v375 = vmul.f32 %v311, %v343
      %v376 = vmul.f32 %v312, %v344
      %v377 = vmul.f32 %v313, %v345
      %v378 = vmul.f32 %v314, %v346
      %v379 = vmul.f32 %v315, %v347
      %v380 = vmul.f32 %v316, %v348
      %v381 = vmul.f32 %v317, %v349
      %v382 = vmul.f32 %v318, %v350
      %v383 = vmul.f32 %v319, %v351
      %v384 = vmul.f32 %v320, %v352
      %v385 = vmul.f32 %v321, %v353
      %v386 = vmul.f32 %v322, %v354
      %v387 = vmul.f32 %v323, %v355
      %v388 = vmul.f32 %v324, %v356
      %v389 = vmul.f32 %v325, %v357
      %v390 = vmul.f32 %v326, %v358
      %v391 = vmul.f32 %v327, %v359
      %v392 = vmul.f32 %v328, %v360
      %v393 = vmul.f32 %v329, %v361
      %v394 = vmul.f32 %v266, 0.0
      %v395 = vmul.f32 %v267, 0.0
      %v396 = vmul.f32 %v268, 0.0
      %v397 = vmul.f32 %v269, 0.0
      %v398 = vmul.f32 %v270, 0.0
      %v399 = vmul.f32 %v271, 0.0
      %v400 = vmul.f32 %v272, 0.0
      %v401 = vmul.f32 %v273, 0.0
      %v402 = vmul.f32 %v274, 0.0
      %v403 = vmul.f32 %v275, 0.0
      %v404 = vmul.f32 %v276, 0.0
      %v405 = vmul.f32 %v277, 0.0
      %v406 = vmul.f32 %v278, 0.0
      %v407 = vmul.f32 %v279, 0.0
      %v408 = vmul.f32 %v280, 0.0
      %v409 = vmul.f32 %v281, 0.0
      %v410 = vmul.f32 %v282, 0.0
      %v411 = vmul.f32 %v283, 0.0
      %v412 = vmul.f32 %v284, 0.0
      %v413 = vmul.f32 %v285, 0.0
      %v414 = vmul.f32 %v286, 0.0
      %v415 = vmul.f32 %v287, 0.0
      %v416 = vmul.f32 %v288, 0.0
      %v417 = vmul.f32 %v289, 0.0
      %v418 = vmul.f32 %v290, 0.0
      %v419 = vmul.f32 %v291, 0.0
      %v420 = vmul.f32 %v292, 0.0
      %v421 = vmul.f32 %v293, 0.0
      %v422 = vmul.f32 %v294, 0.0
      %v423 = vmul.f32 %v295, 0.0
      %v424 = vmul.f32 %v296, 0.0
      %v425 = vmul.f32 %v297, 0.0
      %v426 = vadd.f32 %v362, %v394
      %v427 = vadd.f32 %v363, %v395
      %v428 = vadd.f32 %v364, %v396
      %v429 = vadd.f32 %v365, %v397
      %v430 = vadd.f32 %v366, %v398
      %v431 = vadd.f32 %v367, %v399
      %v432 = vadd.f32 %v368, %v400
      %v433 = vadd.f32 %v369, %v401
      %v434 = vadd.f32 %v370, %v402
      %v435 = vadd.f32 %v371, %v403
      %v436 = vadd.f32 %v372, %v404
      %v437 = vadd.f32 %v373, %v405
      %v438 = vadd.f32 %v374, %v406
      %v439 = vadd.f32 %v375, %v407
      %v440 = vadd.f32 %v376, %v408
      %v441 = vadd.f32 %v377, %v409
      %v442 = vadd.f32 %v378, %v410
      %v443 = vadd.f32 %v379, %v411
      %v444 = vadd.f32 %v380, %v412
      %v445 = vadd.f32 %v381, %v413
      %v446 = vadd.f32 %v382, %v414
      %v447 = vadd.f32 %v383, %v415
      %v448 = vadd.f32 %v384, %v416
      %v449 = vadd.f32 %v385, %v417
      %v450 = vadd.f32 %v386, %v418
      %v451 = vadd.f32 %v387, %v419
      %v452 = vadd.f32 %v388, %v420
      %v453 = vadd.f32 %v389, %v421
      %v454 = vadd.f32 %v390, %v422
      %v455 = vadd.f32 %v391, %v423
      %v456 = vadd.f32 %v392, %v424
      %v457 = vadd.f32 %v393, %v425
      %v458 = vld [vmem:[%s259] sm:$0xff]
      %v459 = vld [vmem:[%s259 + $0x8] sm:$0xff]
      %v460 = vld [vmem:[%s259 + $0x10] sm:$0xff]
      %v461 = vld [vmem:[%s259 + $0x18] sm:$0xff]
      %v462 = vld [vmem:[%s259 + $0x20] sm:$0xff]
      %v463 = vld [vmem:[%s259 + $0x28] sm:$0xff]
      %v464 = vld [vmem:[%s259 + $0x30] sm:$0xff]
      %v465 = vld [vmem:[%s259 + $0x38] sm:$0xff]
      %v466 = vld [vmem:[%s259 + $0x40] sm:$0xff]
      %v467 = vld [vmem:[%s259 + $0x48] sm:$0xff]
      %v468 = vld [vmem:[%s259 + $0x50] sm:$0xff]
      %v469 = vld [vmem:[%s259 + $0x58] sm:$0xff]
      %v470 = vld [vmem:[%s259 + $0x60] sm:$0xff]
      %v471 = vld [vmem:[%s259 + $0x68] sm:$0xff]
      %v472 = vld [vmem:[%s259 + $0x70] sm:$0xff]
      %v473 = vld [vmem:[%s259 + $0x78] sm:$0xff]
      %v474 = vld [vmem:[%s259 + $0x80] sm:$0xff]
      %v475 = vld [vmem:[%s259 + $0x88] sm:$0xff]
      %v476 = vld [vmem:[%s259 + $0x90] sm:$0xff]
      %v477 = vld [vmem:[%s259 + $0x98] sm:$0xff]
      %v478 = vld [vmem:[%s259 + $0xa0] sm:$0xff]
      %v479 = vld [vmem:[%s259 + $0xa8] sm:$0xff]
      %v480 = vld [vmem:[%s259 + $0xb0] sm:$0xff]
      %v481 = vld [vmem:[%s259 + $0xb8] sm:$0xff]
      %v482 = vld [vmem:[%s259 + $0xc0] sm:$0xff]
      %v483 = vld [vmem:[%s259 + $0xc8] sm:$0xff]
      %v484 = vld [vmem:[%s259 + $0xd0] sm:$0xff]
      %v485 = vld [vmem:[%s259 + $0xd8] sm:$0xff]
      %v486 = vld [vmem:[%s259 + $0xe0] sm:$0xff]
      %v487 = vld [vmem:[%s259 + $0xe8] sm:$0xff]
      %v488 = vld [vmem:[%s259 + $0xf0] sm:$0xff]
      %v489 = vld [vmem:[%s259 + $0xf8] sm:$0xff]
      %v490 = vadd.f32 %v426, %v430
      %v491 = vadd.f32 %v427, %v431
      %v492 = vadd.f32 %v428, %v432
      %v493 = vadd.f32 %v429, %v433
      %v494 = vadd.f32 %v490, %v434
      %v495 = vadd.f32 %v491, %v435
      %v496 = vadd.f32 %v492, %v436
      %v497 = vadd.f32 %v493, %v437
      %v498 = vadd.f32 %v494, %v438
      %v499 = vadd.f32 %v495, %v439
      %v500 = vadd.f32 %v496, %v440
      %v501 = vadd.f32 %v497, %v441
      %v502 = vadd.f32 %v442, %v446
      %v503 = vadd.f32 %v443, %v447
      %v504 = vadd.f32 %v444, %v448
      %v505 = vadd.f32 %v445, %v449
      %v506 = vadd.f32 %v502, %v450
      %v507 = vadd.f32 %v503, %v451
      %v508 = vadd.f32 %v504, %v452
      %v509 = vadd.f32 %v505, %v453
      %v510 = vadd.f32 %v506, %v454
      %v511 = vadd.f32 %v507, %v455
      %v512 = vadd.f32 %v508, %v456
      %v513 = vadd.f32 %v509, %v457
      %v514 = vld [vmem:[%s3] sm:$0xf]
      %v515 = vld [vmem:[%s3 + $0x4] sm:$0xf]
      %v516 = vld [vmem:[%s3 + $0x8] sm:$0x1]
      %v517 = vunpack.c.l.bf16 %v516
      %v518 = vld [vmem:[%s3 + $0x10] sm:$0xf]
      %v519 = vld [vmem:[%s3 + $0x14] sm:$0xf]
      %v520 = vld [vmem:[%s3 + $0x18] sm:$0xf]
      %v521 = vld [vmem:[%s3 + $0x1c] sm:$0xf]
      %v522 = vld [vmem:[%s3 + $0x20] sm:$0x1]
      %v523 = vunpack.c.l.bf16 %v522
      %v524 = vpack.c.bf16 %v427, %v426
      %v525 = vpack.c.bf16 %v429, %v428
      %v526 = vpack.c.bf16 %v431, %v430
      %v527 = vpack.c.bf16 %v433, %v432
      %v528 = vpack.c.bf16 %v435, %v434
      %v529 = vpack.c.bf16 %v437, %v436
      %v530 = vpack.c.bf16 %v439, %v438
      %v531 = vpack.c.bf16 %v441, %v440
      %v532 = vpack.c.bf16 %v443, %v442
      %v533 = vpack.c.bf16 %v445, %v444
      %v534 = vpack.c.bf16 %v447, %v446
      %v535 = vpack.c.bf16 %v449, %v448
      %v536 = vpack.c.bf16 %v451, %v450
      %v537 = vpack.c.bf16 %v453, %v452
      %v538 = vpack.c.bf16 %v455, %v454
      %v539 = vpack.c.bf16 %v457, %v456
      %v572 = vunpack.c.l.b16 %v458
      %v573 = vunpack.c.h.b16 %v458
      %v574 = vunpack.c.l.b16 %v459
      %v575 = vunpack.c.h.b16 %v459
      %v576 = vunpack.c.l.b16 %v460
      %v577 = vunpack.c.h.b16 %v460
      %v578 = vunpack.c.l.b16 %v461
      %v579 = vunpack.c.h.b16 %v461
      %v580 = vunpack.c.l.b16 %v462
      %v581 = vunpack.c.h.b16 %v462
      %v582 = vunpack.c.l.b16 %v463
      %v583 = vunpack.c.h.b16 %v463
      %v584 = vunpack.c.l.b16 %v464
      %v585 = vunpack.c.h.b16 %v464
      %v586 = vunpack.c.l.b16 %v465
      %v587 = vunpack.c.h.b16 %v465
      %v588 = vunpack.c.l.b16 %v466
      %v589 = vunpack.c.h.b16 %v466
      %v590 = vunpack.c.l.b16 %v467
      %v591 = vunpack.c.h.b16 %v467
      %v592 = vunpack.c.l.b16 %v468
      %v593 = vunpack.c.h.b16 %v468
      %v594 = vunpack.c.l.b16 %v469
      %v595 = vunpack.c.h.b16 %v469
      %v596 = vunpack.c.l.b16 %v470
      %v597 = vunpack.c.h.b16 %v470
      %v598 = vunpack.c.l.b16 %v471
      %v599 = vunpack.c.h.b16 %v471
      %v600 = vunpack.c.l.b16 %v472
      %v601 = vunpack.c.h.b16 %v472
      %v602 = vunpack.c.l.b16 %v473
      %v603 = vunpack.c.h.b16 %v473
      %v604 = vunpack.c.l.b16 %v474
      %v605 = vunpack.c.h.b16 %v474
      %v606 = vunpack.c.l.b16 %v475
      %v607 = vunpack.c.h.b16 %v475
      %v608 = vunpack.c.l.b16 %v476
      %v609 = vunpack.c.h.b16 %v476
      %v610 = vunpack.c.l.b16 %v477
      %v611 = vunpack.c.h.b16 %v477
      %v612 = vunpack.c.l.b16 %v478
      %v613 = vunpack.c.h.b16 %v478
      %v614 = vunpack.c.l.b16 %v479
      %v615 = vunpack.c.h.b16 %v479
      %v616 = vunpack.c.l.b16 %v480
      %v617 = vunpack.c.h.b16 %v480
      %v618 = vunpack.c.l.b16 %v481
      %v619 = vunpack.c.h.b16 %v481
      %v620 = vunpack.c.l.b16 %v482
      %v621 = vunpack.c.h.b16 %v482
      %v622 = vunpack.c.l.b16 %v483
      %v623 = vunpack.c.h.b16 %v483
      %v624 = vunpack.c.l.b16 %v484
      %v625 = vunpack.c.h.b16 %v484
      %v626 = vunpack.c.l.b16 %v485
      %v627 = vunpack.c.h.b16 %v485
      %v628 = vunpack.c.l.b16 %v486
      %v629 = vunpack.c.h.b16 %v486
      %v630 = vunpack.c.l.b16 %v487
      %v631 = vunpack.c.h.b16 %v487
      %v632 = vunpack.c.l.b16 %v488
      %v633 = vunpack.c.h.b16 %v488
      %v634 = vunpack.c.l.b16 %v489
      %v635 = vunpack.c.h.b16 %v489
      %v636 = vpack.c.b16 %v574, %v572
      %v637 = vpack.c.b16 %v575, %v573
      %v638 = vpack.c.b16 %v578, %v576
      %v639 = vpack.c.b16 %v579, %v577
      %v640 = vpack.c.b16 %v582, %v580
      %v641 = vpack.c.b16 %v583, %v581
      %v642 = vpack.c.b16 %v586, %v584
      %v643 = vpack.c.b16 %v587, %v585
      %v644 = vpack.c.b16 %v590, %v588
      %v645 = vpack.c.b16 %v591, %v589
      %v646 = vpack.c.b16 %v594, %v592
      %v647 = vpack.c.b16 %v595, %v593
      %v648 = vpack.c.b16 %v598, %v596
      %v649 = vpack.c.b16 %v599, %v597
      %v650 = vpack.c.b16 %v602, %v600
      %v651 = vpack.c.b16 %v603, %v601
      %v652 = vpack.c.b16 %v606, %v604
      %v653 = vpack.c.b16 %v607, %v605
      %v654 = vpack.c.b16 %v610, %v608
      %v655 = vpack.c.b16 %v611, %v609
      %v656 = vpack.c.b16 %v614, %v612
      %v657 = vpack.c.b16 %v615, %v613
      %v658 = vpack.c.b16 %v618, %v616
      %v659 = vpack.c.b16 %v619, %v617
      %v660 = vpack.c.b16 %v622, %v620
      %v661 = vpack.c.b16 %v623, %v621
      %v662 = vpack.c.b16 %v626, %v624
      %v663 = vpack.c.b16 %v627, %v625
      %v664 = vpack.c.b16 %v630, %v628
      %v665 = vpack.c.b16 %v631, %v629
      %v666 = vpack.c.b16 %v634, %v632
      %v667 = vpack.c.b16 %v635, %v633
      %700 = vmatprep.subr.bf16.mxu0 0
      %701 = vmatpush1.bf16.msra.mxu0 %v524
      %702 = vmatprep.subr.bf16.mxu0 0
      %703 = vmatpush1.bf16.msra.mxu0 %v525
      %704 = vmatprep.subr.bf16.mxu0 0
      %705 = vmatpush1.bf16.msra.mxu0 %v526
      %706 = vmatprep.subr.bf16.mxu0 0
      %707 = vmatpush1.bf16.msra.mxu0 %v527
      %708 = vmatprep.subr.bf16.mxu0 0
      %709 = vmatpush1.bf16.msra.mxu0 %v528
      %710 = vmatprep.subr.bf16.mxu0 0
      %711 = vmatpush1.bf16.msra.mxu0 %v529
      %712 = vmatprep.subr.bf16.mxu0 0
      %713 = vmatpush1.bf16.msra.mxu0 %v530
      %714 = vmatprep.subr.bf16.mxu0 0
      %715 = vmatpush1.bf16.msra.mxu0 %v531
      %716 = vmatprep.subr.bf16.mxu0 0
      %717 = vmatpush1.bf16.msra.mxu0 %v532
      %718 = vmatprep.subr.bf16.mxu0 0
      %719 = vmatpush1.bf16.msra.mxu0 %v533
      %720 = vmatprep.subr.bf16.mxu0 0
      %721 = vmatpush1.bf16.msra.mxu0 %v534
      %722 = vmatprep.subr.bf16.mxu0 0
      %723 = vmatpush1.bf16.msra.mxu0 %v535
      %724 = vmatprep.subr.bf16.mxu0 0
      %725 = vmatpush1.bf16.msra.mxu0 %v536
      %726 = vmatprep.subr.bf16.mxu0 0
      %727 = vmatpush1.bf16.msra.mxu0 %v537
      %728 = vmatprep.subr.bf16.mxu0 0
      %729 = vmatpush1.bf16.msra.mxu0 %v538
      %730 = vmatprep.subr.bf16.mxu0 0
      %731 = vmatpush1.bf16.msra.mxu0 %v539
      %732 = vmatprep.mubr.bf16.mxu0 %v637
      %733 = vmatmul.mubr.bf16.gmra.mrb[0].mxu0 %v636
      %v734 = vpop.f32.mrb[0].mxu0
      %v735 = vadd.f32 0.0, %v734
      %v736 = vpop.f32.mrb[0].mxu0
      %v737 = vpop.f32.mrb[0].mxu0
      %v738 = vadd.f32 0.0, %v737
      %v739 = vpop.f32.mrb[0].mxu0
      %740 = vmatprep.mubr.bf16.mxu0 %v639
      %741 = vmatmul.mubr.bf16.gmra.mrb[0].mxu0 %v638
      %v742 = vpop.f32.mrb[0].mxu0
      %v743 = vadd.f32 0.0, %v742
      %v744 = vpop.f32.mrb[0].mxu0
      %v745 = vpop.f32.mrb[0].mxu0
      %v746 = vadd.f32 0.0, %v745
      %v747 = vpop.f32.mrb[0].mxu0
      %748 = vmatprep.mubr.bf16.mxu0 %v641
      %749 = vmatmul.mubr.bf16.gmra.mrb[0].mxu0 %v640
      %v750 = vpop.f32.mrb[0].mxu0
      %v751 = vadd.f32 0.0, %v750
      %v752 = vpop.f32.mrb[0].mxu0
      %v753 = vpop.f32.mrb[0].mxu0
      %v754 = vadd.f32 0.0, %v753
      %v755 = vpop.f32.mrb[0].mxu0
      %756 = vmatprep.mubr.bf16.mxu0 %v643
      %757 = vmatmul.mubr.bf16.gmra.mrb[0].mxu0 %v642
      %v758 = vpop.f32.mrb[0].mxu0
      %v759 = vadd.f32 0.0, %v758
      %v760 = vpop.f32.mrb[0].mxu0
      %v761 = vpop.f32.mrb[0].mxu0
      %v762 = vadd.f32 0.0, %v761
      %v763 = vpop.f32.mrb[0].mxu0
      %764 = vmatprep.mubr.bf16.mxu0 %v645
      %765 = vmatmul.mubr.bf16.gmra.mrb[0].mxu0 %v644
      %v766 = vpop.f32.mrb[0].mxu0
      %v767 = vadd.f32 0.0, %v766
      %v768 = vpop.f32.mrb[0].mxu0
      %v769 = vpop.f32.mrb[0].mxu0
      %v770 = vadd.f32 0.0, %v769
      %v771 = vpop.f32.mrb[0].mxu0
      %772 = vmatprep.mubr.bf16.mxu0 %v647
      %773 = vmatmul.mubr.bf16.gmra.mrb[0].mxu0 %v646
      %v774 = vpop.f32.mrb[0].mxu0
      %v775 = vadd.f32 0.0, %v774
      %v776 = vpop.f32.mrb[0].mxu0
      %v777 = vpop.f32.mrb[0].mxu0
      %v778 = vadd.f32 0.0, %v777
      %v779 = vpop.f32.mrb[0].mxu0
      %780 = vmatprep.mubr.bf16.mxu0 %v649
      %781 = vmatmul.mubr.bf16.gmra.mrb[0].mxu0 %v648
      %v782 = vpop.f32.mrb[0].mxu0
      %v783 = vadd.f32 0.0, %v782
      %v784 = vpop.f32.mrb[0].mxu0
      %v785 = vpop.f32.mrb[0].mxu0
      %v786 = vadd.f32 0.0, %v785
      %v787 = vpop.f32.mrb[0].mxu0
      %788 = vmatprep.mubr.bf16.mxu0 %v651
      %789 = vmatmul.mubr.bf16.gmra.mrb[0].mxu0 %v650
      %v790 = vpop.f32.mrb[0].mxu0
      %v791 = vadd.f32 0.0, %v790
      %v792 = vpop.f32.mrb[0].mxu0
      %v793 = vpop.f32.mrb[0].mxu0
      %v794 = vadd.f32 0.0, %v793
      %v795 = vpop.f32.mrb[0].mxu0
      %796 = vmatprep.mubr.bf16.mxu0 %v653
      %797 = vmatmul.mubr.bf16.gmra.mrb[0].mxu0 %v652
      %v798 = vpop.f32.mrb[0].mxu0
      %v799 = vadd.f32 0.0, %v798
      %v800 = vpop.f32.mrb[0].mxu0
      %v801 = vpop.f32.mrb[0].mxu0
      %v802 = vadd.f32 0.0, %v801
      %v803 = vpop.f32.mrb[0].mxu0
      %804 = vmatprep.mubr.bf16.mxu0 %v655
      %805 = vmatmul.mubr.bf16.gmra.mrb[0].mxu0 %v654
      %v806 = vpop.f32.mrb[0].mxu0
      %v807 = vadd.f32 0.0, %v806
      %v808 = vpop.f32.mrb[0].mxu0
      %v809 = vpop.f32.mrb[0].mxu0
      %v810 = vadd.f32 0.0, %v809
      %v811 = vpop.f32.mrb[0].mxu0
      %812 = vmatprep.mubr.bf16.mxu0 %v657
      %813 = vmatmul.mubr.bf16.gmra.mrb[0].mxu0 %v656
      %v814 = vpop.f32.mrb[0].mxu0
      %v815 = vadd.f32 0.0, %v814
      %v816 = vpop.f32.mrb[0].mxu0
      %v817 = vpop.f32.mrb[0].mxu0
      %v818 = vadd.f32 0.0, %v817
      %v819 = vpop.f32.mrb[0].mxu0
      %820 = vmatprep.mubr.bf16.mxu0 %v659
      %821 = vmatmul.mubr.bf16.gmra.mrb[0].mxu0 %v658
      %v822 = vpop.f32.mrb[0].mxu0
      %v823 = vadd.f32 0.0, %v822
      %v824 = vpop.f32.mrb[0].mxu0
      %v825 = vpop.f32.mrb[0].mxu0
      %v826 = vadd.f32 0.0, %v825
      %v827 = vpop.f32.mrb[0].mxu0
      %828 = vmatprep.mubr.bf16.mxu0 %v661
      %829 = vmatmul.mubr.bf16.gmra.mrb[0].mxu0 %v660
      %v830 = vpop.f32.mrb[0].mxu0
      %v831 = vadd.f32 0.0, %v830
      %v832 = vpop.f32.mrb[0].mxu0
      %v833 = vpop.f32.mrb[0].mxu0
      %v834 = vadd.f32 0.0, %v833
      %v835 = vpop.f32.mrb[0].mxu0
      %836 = vmatprep.mubr.bf16.mxu0 %v663
      %837 = vmatmul.mubr.bf16.gmra.mrb[0].mxu0 %v662
      %v838 = vpop.f32.mrb[0].mxu0
      %v839 = vadd.f32 0.0, %v838
      %v840 = vpop.f32.mrb[0].mxu0
      %v841 = vpop.f32.mrb[0].mxu0
      %v842 = vadd.f32 0.0, %v841
      %v843 = vpop.f32.mrb[0].mxu0
      %844 = vmatprep.mubr.bf16.mxu0 %v665
      %845 = vmatmul.mubr.bf16.gmra.mrb[0].mxu0 %v664
      %v846 = vpop.f32.mrb[0].mxu0
      %v847 = vadd.f32 0.0, %v846
      %v848 = vpop.f32.mrb[0].mxu0
      %v849 = vpop.f32.mrb[0].mxu0
      %v850 = vadd.f32 0.0, %v849
      %v851 = vpop.f32.mrb[0].mxu0
      %852 = vmatprep.mubr.bf16.mxu0 %v667
      %853 = vmatmul.mubr.bf16.gmra.mrb[0].mxu0 %v666
      %v854 = vpop.f32.mrb[0].mxu0
      %v855 = vadd.f32 0.0, %v854
      %v856 = vpop.f32.mrb[0].mxu0
      %v857 = vpop.f32.mrb[0].mxu0
      %v858 = vadd.f32 0.0, %v857
      %v859 = vpop.f32.mrb[0].mxu0
      %860 = vdwg.mxu0
      %v861 = vpack.c.bf16 %v738, %v735
      %v862 = vpack.c.bf16 %v746, %v743
      %v863 = vpack.c.bf16 %v754, %v751
      %v864 = vpack.c.bf16 %v762, %v759
      %v865 = vpack.c.bf16 %v770, %v767
      %v866 = vpack.c.bf16 %v778, %v775
      %v867 = vpack.c.bf16 %v786, %v783
      %v868 = vpack.c.bf16 %v794, %v791
      %v869 = vpack.c.bf16 %v802, %v799
      %v870 = vpack.c.bf16 %v810, %v807
      %v871 = vpack.c.bf16 %v818, %v815
      %v872 = vpack.c.bf16 %v826, %v823
      %v873 = vpack.c.bf16 %v834, %v831
      %v874 = vpack.c.bf16 %v842, %v839
      %v875 = vpack.c.bf16 %v850, %v847
      %v876 = vpack.c.bf16 %v858, %v855
      %v877 = vlaneseq
      %v878 = vshrl.u32 %v877, 7
      %v879 = vsub.s32 0, %v878
      %v880 = vrot.slane %v517, %v879
      %v883 = vunpack.c.l.b16 %v514
      %v884 = vunpack.c.l.b16 %v515
      %v885 = vpack.c.b16 %v884, %v883
      %vm887 = vcmask 130048
      %v889 = vsel %vm887, %v861, 0
      %v892 = vsel %vm887, %v862, 0
      %v895 = vsel %vm887, %v863, 0
      %v898 = vsel %vm887, %v864, 0
      %v901 = vsel %vm887, %v865, 0
      %v904 = vsel %vm887, %v866, 0
      %v907 = vsel %vm887, %v867, 0
      %v910 = vsel %vm887, %v868, 0
      %v913 = vsel %vm887, %v869, 0
      %v916 = vsel %vm887, %v870, 0
      %v919 = vsel %vm887, %v871, 0
      %v922 = vsel %vm887, %v872, 0
      %v925 = vsel %vm887, %v873, 0
      %v928 = vsel %vm887, %v874, 0
      %v931 = vsel %vm887, %v875, 0
      %v934 = vsel %vm887, %v876, 0
      %936 = vmatprep.subr.bf16.mxu0 0
      %937 = vmatpush1.bf16.msra.mxu0 %v885
      %938 = vmatprep.subr.bf16.mxu0 0
      %939 = vmatpush1.bf16.msra.mxu0 0
      %940 = vmatprep.subr.bf16.mxu0 0
      %941 = vmatpush1.bf16.msra.mxu0 0
      %942 = vmatprep.subr.bf16.mxu0 0
      %943 = vmatpush1.bf16.msra.mxu0 0
      %944 = vmatprep.subr.bf16.mxu0 0
      %945 = vmatpush1.bf16.msra.mxu0 0
      %946 = vmatprep.subr.bf16.mxu0 0
      %947 = vmatpush1.bf16.msra.mxu0 0
      %948 = vmatprep.subr.bf16.mxu0 0
      %949 = vmatpush1.bf16.msra.mxu0 0
      %950 = vmatprep.subr.bf16.mxu0 0
      %951 = vmatpush1.bf16.msra.mxu0 0
      %952 = vmatprep.subr.bf16.mxu0 0
      %953 = vmatpush1.bf16.msra.mxu0 0
      %954 = vmatprep.subr.bf16.mxu0 0
      %955 = vmatpush1.bf16.msra.mxu0 0
      %956 = vmatprep.subr.bf16.mxu0 0
      %957 = vmatpush1.bf16.msra.mxu0 0
      %958 = vmatprep.subr.bf16.mxu0 0
      %959 = vmatpush1.bf16.msra.mxu0 0
      %960 = vmatprep.subr.bf16.mxu0 0
      %961 = vmatpush1.bf16.msra.mxu0 0
      %962 = vmatprep.subr.bf16.mxu0 0
      %963 = vmatpush1.bf16.msra.mxu0 0
      %964 = vmatprep.subr.bf16.mxu0 0
      %965 = vmatpush1.bf16.msra.mxu0 0
      %966 = vmatprep.subr.bf16.mxu0 0
      %967 = vmatpush1.bf16.msra.mxu0 0
      %968 = vmatprep.mubr.bf16.mxu0 0
      %969 = vmatmul.mubr.bf16.gmra.mrb[0].mxu0 %v889
      %v970 = vpop.f32.mrb[0].mxu0
      %v971 = vadd.f32 %v880, %v970
      %v972 = vpop.f32.mrb[0].mxu0
      %v973 = vpop.f32.mrb[0].mxu0
      %v974 = vadd.f32 %v880, %v973
      %v975 = vpop.f32.mrb[0].mxu0
      %976 = vmatprep.mubr.bf16.mxu0 0
      %977 = vmatmul.mubr.bf16.gmra.mrb[0].mxu0 %v892
      %v978 = vpop.f32.mrb[0].mxu0
      %v979 = vadd.f32 %v880, %v978
      %v980 = vpop.f32.mrb[0].mxu0
      %v981 = vpop.f32.mrb[0].mxu0
      %v982 = vadd.f32 %v880, %v981
      %v983 = vpop.f32.mrb[0].mxu0
      %984 = vmatprep.mubr.bf16.mxu0 0
      %985 = vmatmul.mubr.bf16.gmra.mrb[0].mxu0 %v895
      %v986 = vpop.f32.mrb[0].mxu0
      %v987 = vadd.f32 %v880, %v986
      %v988 = vpop.f32.mrb[0].mxu0
      %v989 = vpop.f32.mrb[0].mxu0
      %v990 = vadd.f32 %v880, %v989
      %v991 = vpop.f32.mrb[0].mxu0
      %992 = vmatprep.mubr.bf16.mxu0 0
      %993 = vmatmul.mubr.bf16.gmra.mrb[0].mxu0 %v898
      %v994 = vpop.f32.mrb[0].mxu0
      %v995 = vadd.f32 %v880, %v994
      %v996 = vpop.f32.mrb[0].mxu0
      %v997 = vpop.f32.mrb[0].mxu0
      %v998 = vadd.f32 %v880, %v997
      %v999 = vpop.f32.mrb[0].mxu0
      %1000 = vmatprep.mubr.bf16.mxu0 0
      %1001 = vmatmul.mubr.bf16.gmra.mrb[0].mxu0 %v901
      %v1002 = vpop.f32.mrb[0].mxu0
      %v1003 = vadd.f32 %v880, %v1002
      %v1004 = vpop.f32.mrb[0].mxu0
      %v1005 = vpop.f32.mrb[0].mxu0
      %v1006 = vadd.f32 %v880, %v1005
      %v1007 = vpop.f32.mrb[0].mxu0
      %1008 = vmatprep.mubr.bf16.mxu0 0
      %1009 = vmatmul.mubr.bf16.gmra.mrb[0].mxu0 %v904
      %v1010 = vpop.f32.mrb[0].mxu0
      %v1011 = vadd.f32 %v880, %v1010
      %v1012 = vpop.f32.mrb[0].mxu0
      %v1013 = vpop.f32.mrb[0].mxu0
      %v1014 = vadd.f32 %v880, %v1013
      %v1015 = vpop.f32.mrb[0].mxu0
      %1016 = vmatprep.mubr.bf16.mxu0 0
      %1017 = vmatmul.mubr.bf16.gmra.mrb[0].mxu0 %v907
      %v1018 = vpop.f32.mrb[0].mxu0
      %v1019 = vadd.f32 %v880, %v1018
      %v1020 = vpop.f32.mrb[0].mxu0
      %v1021 = vpop.f32.mrb[0].mxu0
      %v1022 = vadd.f32 %v880, %v1021
      %v1023 = vpop.f32.mrb[0].mxu0
      %1024 = vmatprep.mubr.bf16.mxu0 0
      %1025 = vmatmul.mubr.bf16.gmra.mrb[0].mxu0 %v910
      %v1026 = vpop.f32.mrb[0].mxu0
      %v1027 = vadd.f32 %v880, %v1026
      %v1028 = vpop.f32.mrb[0].mxu0
      %v1029 = vpop.f32.mrb[0].mxu0
      %v1030 = vadd.f32 %v880, %v1029
      %v1031 = vpop.f32.mrb[0].mxu0
      %1032 = vmatprep.mubr.bf16.mxu0 0
      %1033 = vmatmul.mubr.bf16.gmra.mrb[0].mxu0 %v913
      %v1034 = vpop.f32.mrb[0].mxu0
      %v1035 = vadd.f32 %v880, %v1034
      %v1036 = vpop.f32.mrb[0].mxu0
      %v1037 = vpop.f32.mrb[0].mxu0
      %v1038 = vadd.f32 %v880, %v1037
      %v1039 = vpop.f32.mrb[0].mxu0
      %1040 = vmatprep.mubr.bf16.mxu0 0
      %1041 = vmatmul.mubr.bf16.gmra.mrb[0].mxu0 %v916
      %v1042 = vpop.f32.mrb[0].mxu0
      %v1043 = vadd.f32 %v880, %v1042
      %v1044 = vpop.f32.mrb[0].mxu0
      %v1045 = vpop.f32.mrb[0].mxu0
      %v1046 = vadd.f32 %v880, %v1045
      %v1047 = vpop.f32.mrb[0].mxu0
      %1048 = vmatprep.mubr.bf16.mxu0 0
      %1049 = vmatmul.mubr.bf16.gmra.mrb[0].mxu0 %v919
      %v1050 = vpop.f32.mrb[0].mxu0
      %v1051 = vadd.f32 %v880, %v1050
      %v1052 = vpop.f32.mrb[0].mxu0
      %v1053 = vpop.f32.mrb[0].mxu0
      %v1054 = vadd.f32 %v880, %v1053
      %v1055 = vpop.f32.mrb[0].mxu0
      %1056 = vmatprep.mubr.bf16.mxu0 0
      %1057 = vmatmul.mubr.bf16.gmra.mrb[0].mxu0 %v922
      %v1058 = vpop.f32.mrb[0].mxu0
      %v1059 = vadd.f32 %v880, %v1058
      %v1060 = vpop.f32.mrb[0].mxu0
      %v1061 = vpop.f32.mrb[0].mxu0
      %v1062 = vadd.f32 %v880, %v1061
      %v1063 = vpop.f32.mrb[0].mxu0
      %1064 = vmatprep.mubr.bf16.mxu0 0
      %1065 = vmatmul.mubr.bf16.gmra.mrb[0].mxu0 %v925
      %v1066 = vpop.f32.mrb[0].mxu0
      %v1067 = vadd.f32 %v880, %v1066
      %v1068 = vpop.f32.mrb[0].mxu0
      %v1069 = vpop.f32.mrb[0].mxu0
      %v1070 = vadd.f32 %v880, %v1069
      %v1071 = vpop.f32.mrb[0].mxu0
      %1072 = vmatprep.mubr.bf16.mxu0 0
      %1073 = vmatmul.mubr.bf16.gmra.mrb[0].mxu0 %v928
      %v1074 = vpop.f32.mrb[0].mxu0
      %v1075 = vadd.f32 %v880, %v1074
      %v1076 = vpop.f32.mrb[0].mxu0
      %v1077 = vpop.f32.mrb[0].mxu0
      %v1078 = vadd.f32 %v880, %v1077
      %v1079 = vpop.f32.mrb[0].mxu0
      %1080 = vmatprep.mubr.bf16.mxu0 0
      %1081 = vmatmul.mubr.bf16.gmra.mrb[0].mxu0 %v931
      %v1082 = vpop.f32.mrb[0].mxu0
      %v1083 = vadd.f32 %v880, %v1082
      %v1084 = vpop.f32.mrb[0].mxu0
      %v1085 = vpop.f32.mrb[0].mxu0
      %v1086 = vadd.f32 %v880, %v1085
      %v1087 = vpop.f32.mrb[0].mxu0
      %1088 = vmatprep.mubr.bf16.mxu0 0
      %1089 = vmatmul.mubr.bf16.gmra.mrb[0].mxu0 %v934
      %v1090 = vpop.f32.mrb[0].mxu0
      %v1091 = vadd.f32 %v880, %v1090
      %v1092 = vpop.f32.mrb[0].mxu0
      %v1093 = vpop.f32.mrb[0].mxu0
      %v1094 = vadd.f32 %v880, %v1093
      %v1095 = vpop.f32.mrb[0].mxu0
      %1096 = vdwg.mxu0
      %v1097 = vmax.f32 %v971, 0.0
      %v1098 = vmax.f32 %v974, 0.0
      %v1099 = vmax.f32 %v979, 0.0
      %v1100 = vmax.f32 %v982, 0.0
      %v1101 = vmax.f32 %v987, 0.0
      %v1102 = vmax.f32 %v990, 0.0
      %v1103 = vmax.f32 %v995, 0.0
      %v1104 = vmax.f32 %v998, 0.0
      %v1105 = vmax.f32 %v1003, 0.0
      %v1106 = vmax.f32 %v1006, 0.0
      %v1107 = vmax.f32 %v1011, 0.0
      %v1108 = vmax.f32 %v1014, 0.0
      %v1109 = vmax.f32 %v1019, 0.0
      %v1110 = vmax.f32 %v1022, 0.0
      %v1111 = vmax.f32 %v1027, 0.0
      %v1112 = vmax.f32 %v1030, 0.0
      %v1113 = vmax.f32 %v1035, 0.0
      %v1114 = vmax.f32 %v1038, 0.0
      %v1115 = vmax.f32 %v1043, 0.0
      %v1116 = vmax.f32 %v1046, 0.0
      %v1117 = vmax.f32 %v1051, 0.0
      %v1118 = vmax.f32 %v1054, 0.0
      %v1119 = vmax.f32 %v1059, 0.0
      %v1120 = vmax.f32 %v1062, 0.0
      %v1121 = vmax.f32 %v1067, 0.0
      %v1122 = vmax.f32 %v1070, 0.0
      %v1123 = vmax.f32 %v1075, 0.0
      %v1124 = vmax.f32 %v1078, 0.0
      %v1125 = vmax.f32 %v1083, 0.0
      %v1126 = vmax.f32 %v1086, 0.0
      %v1127 = vmax.f32 %v1091, 0.0
      %v1128 = vmax.f32 %v1094, 0.0
      %v1129 = vpack.c.bf16 %v1098, %v1097
      %v1130 = vpack.c.bf16 %v1100, %v1099
      %v1131 = vpack.c.bf16 %v1102, %v1101
      %v1132 = vpack.c.bf16 %v1104, %v1103
      %v1133 = vpack.c.bf16 %v1106, %v1105
      %v1134 = vpack.c.bf16 %v1108, %v1107
      %v1135 = vpack.c.bf16 %v1110, %v1109
      %v1136 = vpack.c.bf16 %v1112, %v1111
      %v1137 = vpack.c.bf16 %v1114, %v1113
      %v1138 = vpack.c.bf16 %v1116, %v1115
      %v1139 = vpack.c.bf16 %v1118, %v1117
      %v1140 = vpack.c.bf16 %v1120, %v1119
      %v1141 = vpack.c.bf16 %v1122, %v1121
      %v1142 = vpack.c.bf16 %v1124, %v1123
      %v1143 = vpack.c.bf16 %v1126, %v1125
      %v1144 = vpack.c.bf16 %v1128, %v1127
      %v1145 = vlaneseq
      %v1146 = vshrl.u32 %v1145, 7
      %v1147 = vsub.s32 0, %v1146
      %v1148 = vrot.slane %v523, %v1147
      %v1153 = vunpack.c.l.b16 %v518
      %v1154 = vunpack.c.l.b16 %v519
      %v1155 = vunpack.c.l.b16 %v520
      %v1156 = vunpack.c.l.b16 %v521
      %v1157 = vpack.c.b16 %v1154, %v1153
      %v1158 = vpack.c.b16 %v1156, %v1155
      %vm1161 = vcmask 261120
      %v1163 = vsel %vm1161, %v1129, 0
      %v1166 = vsel %vm1161, %v1130, 0
      %v1169 = vsel %vm1161, %v1131, 0
      %v1172 = vsel %vm1161, %v1132, 0
      %v1175 = vsel %vm1161, %v1133, 0
      %v1178 = vsel %vm1161, %v1134, 0
      %v1181 = vsel %vm1161, %v1135, 0
      %v1184 = vsel %vm1161, %v1136, 0
      %v1187 = vsel %vm1161, %v1137, 0
      %v1190 = vsel %vm1161, %v1138, 0
      %v1193 = vsel %vm1161, %v1139, 0
      %v1196 = vsel %vm1161, %v1140, 0
      %v1199 = vsel %vm1161, %v1141, 0
      %v1202 = vsel %vm1161, %v1142, 0
      %v1205 = vsel %vm1161, %v1143, 0
      %v1208 = vsel %vm1161, %v1144, 0
      %1210 = vmatprep.subr.bf16.mxu0 0
      %1211 = vmatpush1.bf16.msra.mxu0 %v1157
      %1212 = vmatprep.subr.bf16.mxu0 0
      %1213 = vmatpush1.bf16.msra.mxu0 %v1158
      %1214 = vmatprep.subr.bf16.mxu0 0
      %1215 = vmatpush1.bf16.msra.mxu0 0
      %1216 = vmatprep.subr.bf16.mxu0 0
      %1217 = vmatpush1.bf16.msra.mxu0 0
      %1218 = vmatprep.subr.bf16.mxu0 0
      %1219 = vmatpush1.bf16.msra.mxu0 0
      %1220 = vmatprep.subr.bf16.mxu0 0
      %1221 = vmatpush1.bf16.msra.mxu0 0
      %1222 = vmatprep.subr.bf16.mxu0 0
      %1223 = vmatpush1.bf16.msra.mxu0 0
      %1224 = vmatprep.subr.bf16.mxu0 0
      %1225 = vmatpush1.bf16.msra.mxu0 0
      %1226 = vmatprep.subr.bf16.mxu0 0
      %1227 = vmatpush1.bf16.msra.mxu0 0
      %1228 = vmatprep.subr.bf16.mxu0 0
      %1229 = vmatpush1.bf16.msra.mxu0 0
      %1230 = vmatprep.subr.bf16.mxu0 0
      %1231 = vmatpush1.bf16.msra.mxu0 0
      %1232 = vmatprep.subr.bf16.mxu0 0
      %1233 = vmatpush1.bf16.msra.mxu0 0
      %1234 = vmatprep.subr.bf16.mxu0 0
      %1235 = vmatpush1.bf16.msra.mxu0 0
      %1236 = vmatprep.subr.bf16.mxu0 0
      %1237 = vmatpush1.bf16.msra.mxu0 0
      %1238 = vmatprep.subr.bf16.mxu0 0
      %1239 = vmatpush1.bf16.msra.mxu0 0
      %1240 = vmatprep.subr.bf16.mxu0 0
      %1241 = vmatpush1.bf16.msra.mxu0 0
      %1242 = vmatprep.mubr.bf16.mxu0 0
      %1243 = vmatmul.mubr.bf16.gmra.mrb[0].mxu0 %v1163
      %v1244 = vpop.f32.mrb[0].mxu0
      %v1245 = vadd.f32 %v1148, %v1244
      %v1246 = vpop.f32.mrb[0].mxu0
      %v1247 = vpop.f32.mrb[0].mxu0
      %v1248 = vadd.f32 %v1148, %v1247
      %v1249 = vpop.f32.mrb[0].mxu0
      %1250 = vmatprep.mubr.bf16.mxu0 0
      %1251 = vmatmul.mubr.bf16.gmra.mrb[0].mxu0 %v1166
      %v1252 = vpop.f32.mrb[0].mxu0
      %v1253 = vadd.f32 %v1148, %v1252
      %v1254 = vpop.f32.mrb[0].mxu0
      %v1255 = vpop.f32.mrb[0].mxu0
      %v1256 = vadd.f32 %v1148, %v1255
      %v1257 = vpop.f32.mrb[0].mxu0
      %1258 = vmatprep.mubr.bf16.mxu0 0
      %1259 = vmatmul.mubr.bf16.gmra.mrb[0].mxu0 %v1169
      %v1260 = vpop.f32.mrb[0].mxu0
      %v1261 = vadd.f32 %v1148, %v1260
      %v1262 = vpop.f32.mrb[0].mxu0
      %v1263 = vpop.f32.mrb[0].mxu0
      %v1264 = vadd.f32 %v1148, %v1263
      %v1265 = vpop.f32.mrb[0].mxu0
      %1266 = vmatprep.mubr.bf16.mxu0 0
      %1267 = vmatmul.mubr.bf16.gmra.mrb[0].mxu0 %v1172
      %v1268 = vpop.f32.mrb[0].mxu0
      %v1269 = vadd.f32 %v1148, %v1268
      %v1270 = vpop.f32.mrb[0].mxu0
      %v1271 = vpop.f32.mrb[0].mxu0
      %v1272 = vadd.f32 %v1148, %v1271
      %v1273 = vpop.f32.mrb[0].mxu0
      %1274 = vmatprep.mubr.bf16.mxu0 0
      %1275 = vmatmul.mubr.bf16.gmra.mrb[0].mxu0 %v1175
      %v1276 = vpop.f32.mrb[0].mxu0
      %v1277 = vadd.f32 %v1148, %v1276
      %v1278 = vpop.f32.mrb[0].mxu0
      %v1279 = vpop.f32.mrb[0].mxu0
      %v1280 = vadd.f32 %v1148, %v1279
      %v1281 = vpop.f32.mrb[0].mxu0
      %1282 = vmatprep.mubr.bf16.mxu0 0
      %1283 = vmatmul.mubr.bf16.gmra.mrb[0].mxu0 %v1178
      %v1284 = vpop.f32.mrb[0].mxu0
      %v1285 = vadd.f32 %v1148, %v1284
      %v1286 = vpop.f32.mrb[0].mxu0
      %v1287 = vpop.f32.mrb[0].mxu0
      %v1288 = vadd.f32 %v1148, %v1287
      %v1289 = vpop.f32.mrb[0].mxu0
      %1290 = vmatprep.mubr.bf16.mxu0 0
      %1291 = vmatmul.mubr.bf16.gmra.mrb[0].mxu0 %v1181
      %v1292 = vpop.f32.mrb[0].mxu0
      %v1293 = vadd.f32 %v1148, %v1292
      %v1294 = vpop.f32.mrb[0].mxu0
      %v1295 = vpop.f32.mrb[0].mxu0
      %v1296 = vadd.f32 %v1148, %v1295
      %v1297 = vpop.f32.mrb[0].mxu0
      %1298 = vmatprep.mubr.bf16.mxu0 0
      %1299 = vmatmul.mubr.bf16.gmra.mrb[0].mxu0 %v1184
      %v1300 = vpop.f32.mrb[0].mxu0
      %v1301 = vadd.f32 %v1148, %v1300
      %v1302 = vpop.f32.mrb[0].mxu0
      %v1303 = vpop.f32.mrb[0].mxu0
      %v1304 = vadd.f32 %v1148, %v1303
      %v1305 = vpop.f32.mrb[0].mxu0
      %1306 = vmatprep.mubr.bf16.mxu0 0
      %1307 = vmatmul.mubr.bf16.gmra.mrb[0].mxu0 %v1187
      %v1308 = vpop.f32.mrb[0].mxu0
      %v1309 = vadd.f32 %v1148, %v1308
      %v1310 = vpop.f32.mrb[0].mxu0
      %v1311 = vpop.f32.mrb[0].mxu0
      %v1312 = vadd.f32 %v1148, %v1311
      %v1313 = vpop.f32.mrb[0].mxu0
      %1314 = vmatprep.mubr.bf16.mxu0 0
      %1315 = vmatmul.mubr.bf16.gmra.mrb[0].mxu0 %v1190
      %v1316 = vpop.f32.mrb[0].mxu0
      %v1317 = vadd.f32 %v1148, %v1316
      %v1318 = vpop.f32.mrb[0].mxu0
      %v1319 = vpop.f32.mrb[0].mxu0
      %v1320 = vadd.f32 %v1148, %v1319
      %v1321 = vpop.f32.mrb[0].mxu0
      %1322 = vmatprep.mubr.bf16.mxu0 0
      %1323 = vmatmul.mubr.bf16.gmra.mrb[0].mxu0 %v1193
      %v1324 = vpop.f32.mrb[0].mxu0
      %v1325 = vadd.f32 %v1148, %v1324
      %v1326 = vpop.f32.mrb[0].mxu0
      %v1327 = vpop.f32.mrb[0].mxu0
      %v1328 = vadd.f32 %v1148, %v1327
      %v1329 = vpop.f32.mrb[0].mxu0
      %1330 = vmatprep.mubr.bf16.mxu0 0
      %1331 = vmatmul.mubr.bf16.gmra.mrb[0].mxu0 %v1196
      %v1332 = vpop.f32.mrb[0].mxu0
      %v1333 = vadd.f32 %v1148, %v1332
      %v1334 = vpop.f32.mrb[0].mxu0
      %v1335 = vpop.f32.mrb[0].mxu0
      %v1336 = vadd.f32 %v1148, %v1335
      %v1337 = vpop.f32.mrb[0].mxu0
      %1338 = vmatprep.mubr.bf16.mxu0 0
      %1339 = vmatmul.mubr.bf16.gmra.mrb[0].mxu0 %v1199
      %v1340 = vpop.f32.mrb[0].mxu0
      %v1341 = vadd.f32 %v1148, %v1340
      %v1342 = vpop.f32.mrb[0].mxu0
      %v1343 = vpop.f32.mrb[0].mxu0
      %v1344 = vadd.f32 %v1148, %v1343
      %v1345 = vpop.f32.mrb[0].mxu0
      %1346 = vmatprep.mubr.bf16.mxu0 0
      %1347 = vmatmul.mubr.bf16.gmra.mrb[0].mxu0 %v1202
      %v1348 = vpop.f32.mrb[0].mxu0
      %v1349 = vadd.f32 %v1148, %v1348
      %v1350 = vpop.f32.mrb[0].mxu0
      %v1351 = vpop.f32.mrb[0].mxu0
      %v1352 = vadd.f32 %v1148, %v1351
      %v1353 = vpop.f32.mrb[0].mxu0
      %1354 = vmatprep.mubr.bf16.mxu0 0
      %1355 = vmatmul.mubr.bf16.gmra.mrb[0].mxu0 %v1205
      %v1356 = vpop.f32.mrb[0].mxu0
      %v1357 = vadd.f32 %v1148, %v1356
      %v1358 = vpop.f32.mrb[0].mxu0
      %v1359 = vpop.f32.mrb[0].mxu0
      %v1360 = vadd.f32 %v1148, %v1359
      %v1361 = vpop.f32.mrb[0].mxu0
      %1362 = vmatprep.mubr.bf16.mxu0 0
      %1363 = vmatmul.mubr.bf16.gmra.mrb[0].mxu0 %v1208
      %v1364 = vpop.f32.mrb[0].mxu0
      %v1365 = vadd.f32 %v1148, %v1364
      %v1366 = vpop.f32.mrb[0].mxu0
      %v1367 = vpop.f32.mrb[0].mxu0
      %v1368 = vadd.f32 %v1148, %v1367
      %v1369 = vpop.f32.mrb[0].mxu0
      %1370 = vdwg.mxu0
      %v1371 = vmax.f32 %v1245, 0.0
      %v1372 = vmax.f32 %v1248, 0.0
      %v1373 = vmax.f32 %v1253, 0.0
      %v1374 = vmax.f32 %v1256, 0.0
      %v1375 = vmax.f32 %v1261, 0.0
      %v1376 = vmax.f32 %v1264, 0.0
      %v1377 = vmax.f32 %v1269, 0.0
      %v1378 = vmax.f32 %v1272, 0.0
      %v1379 = vmax.f32 %v1277, 0.0
      %v1380 = vmax.f32 %v1280, 0.0
      %v1381 = vmax.f32 %v1285, 0.0
      %v1382 = vmax.f32 %v1288, 0.0
      %v1383 = vmax.f32 %v1293, 0.0
      %v1384 = vmax.f32 %v1296, 0.0
      %v1385 = vmax.f32 %v1301, 0.0
      %v1386 = vmax.f32 %v1304, 0.0
      %v1387 = vmax.f32 %v1309, 0.0
      %v1388 = vmax.f32 %v1312, 0.0
      %v1389 = vmax.f32 %v1317, 0.0
      %v1390 = vmax.f32 %v1320, 0.0
      %v1391 = vmax.f32 %v1325, 0.0
      %v1392 = vmax.f32 %v1328, 0.0
      %v1393 = vmax.f32 %v1333, 0.0
      %v1394 = vmax.f32 %v1336, 0.0
      %v1395 = vmax.f32 %v1341, 0.0
      %v1396 = vmax.f32 %v1344, 0.0
      %v1397 = vmax.f32 %v1349, 0.0
      %v1398 = vmax.f32 %v1352, 0.0
      %v1399 = vmax.f32 %v1357, 0.0
      %v1400 = vmax.f32 %v1360, 0.0
      %v1401 = vmax.f32 %v1365, 0.0
      %v1402 = vmax.f32 %v1368, 0.0
      %v1403 = vadd.f32 %v1371, %v1375
      %v1404 = vadd.f32 %v1372, %v1376
      %v1405 = vadd.f32 %v1373, %v1377
      %v1406 = vadd.f32 %v1374, %v1378
      %v1407 = vadd.f32 %v1403, %v1379
      %v1408 = vadd.f32 %v1404, %v1380
      %v1409 = vadd.f32 %v1405, %v1381
      %v1410 = vadd.f32 %v1406, %v1382
      %v1411 = vadd.f32 %v1407, %v1383
      %v1412 = vadd.f32 %v1408, %v1384
      %v1413 = vadd.f32 %v1409, %v1385
      %v1414 = vadd.f32 %v1410, %v1386
      %v1415 = vadd.f32 %v1387, %v1391
      %v1416 = vadd.f32 %v1388, %v1392
      %v1417 = vadd.f32 %v1389, %v1393
      %v1418 = vadd.f32 %v1390, %v1394
      %v1419 = vadd.f32 %v1415, %v1395
      %v1420 = vadd.f32 %v1416, %v1396
      %v1421 = vadd.f32 %v1417, %v1397
      %v1422 = vadd.f32 %v1418, %v1398
      %v1423 = vadd.f32 %v1419, %v1399
      %v1424 = vadd.f32 %v1420, %v1400
      %v1425 = vadd.f32 %v1421, %v1401
      %v1426 = vadd.f32 %v1422, %v1402
      %v1427 = vld [vmem:[%s3 + $0x28] sm:$0xf]
      %v1428 = vld [vmem:[%s3 + $0x2c] sm:$0xf]
      %v1429 = vld [vmem:[%s3 + $0x30] sm:$0xf]
      %v1430 = vld [vmem:[%s3 + $0x34] sm:$0xf]
      %v1431 = vld [vmem:[%s3 + $0x38] sm:$0x1]
      %v1432 = vunpack.c.l.bf16 %v1431
      %v1433 = vld [vmem:[%s3 + $0x40] sm:$0xf]
      %v1434 = vld [vmem:[%s3 + $0x44] sm:$0xf]
      %v1435 = vld [vmem:[%s3 + $0x48] sm:$0xf]
      %v1436 = vld [vmem:[%s3 + $0x4c] sm:$0xf]
      %v1437 = vld [vmem:[%s3 + $0x50] sm:$0x1]
      %v1438 = vunpack.c.l.bf16 %v1437
      %v1439 = vpack.c.bf16 %v1372, %v1371
      %v1440 = vpack.c.bf16 %v1374, %v1373
      %v1441 = vpack.c.bf16 %v1376, %v1375
      %v1442 = vpack.c.bf16 %v1378, %v1377
      %v1443 = vpack.c.bf16 %v1380, %v1379
      %v1444 = vpack.c.bf16 %v1382, %v1381
      %v1445 = vpack.c.bf16 %v1384, %v1383
      %v1446 = vpack.c.bf16 %v1386, %v1385
      %v1447 = vpack.c.bf16 %v1388, %v1387
      %v1448 = vpack.c.bf16 %v1390, %v1389
      %v1449 = vpack.c.bf16 %v1392, %v1391
      %v1450 = vpack.c.bf16 %v1394, %v1393
      %v1451 = vpack.c.bf16 %v1396, %v1395
      %v1452 = vpack.c.bf16 %v1398, %v1397
      %v1453 = vpack.c.bf16 %v1400, %v1399
      %v1454 = vpack.c.bf16 %v1402, %v1401
      %1455 = vmatprep.subr.bf16.mxu0 0
      %1456 = vmatpush1.bf16.msra.mxu0 %v1439
      %1457 = vmatprep.subr.bf16.mxu0 0
      %1458 = vmatpush1.bf16.msra.mxu0 %v1440
      %1459 = vmatprep.subr.bf16.mxu0 0
      %1460 = vmatpush1.bf16.msra.mxu0 %v1441
      %1461 = vmatprep.subr.bf16.mxu0 0
      %1462 = vmatpush1.bf16.msra.mxu0 %v1442
      %1463 = vmatprep.subr.bf16.mxu0 0
      %1464 = vmatpush1.bf16.msra.mxu0 %v1443
      %1465 = vmatprep.subr.bf16.mxu0 0
      %1466 = vmatpush1.bf16.msra.mxu0 %v1444
      %1467 = vmatprep.subr.bf16.mxu0 0
      %1468 = vmatpush1.bf16.msra.mxu0 %v1445
      %1469 = vmatprep.subr.bf16.mxu0 0
      %1470 = vmatpush1.bf16.msra.mxu0 %v1446
      %1471 = vmatprep.subr.bf16.mxu0 0
      %1472 = vmatpush1.bf16.msra.mxu0 %v1447
      %1473 = vmatprep.subr.bf16.mxu0 0
      %1474 = vmatpush1.bf16.msra.mxu0 %v1448
      %1475 = vmatprep.subr.bf16.mxu0 0
      %1476 = vmatpush1.bf16.msra.mxu0 %v1449
      %1477 = vmatprep.subr.bf16.mxu0 0
      %1478 = vmatpush1.bf16.msra.mxu0 %v1450
      %1479 = vmatprep.subr.bf16.mxu0 0
      %1480 = vmatpush1.bf16.msra.mxu0 %v1451
      %1481 = vmatprep.subr.bf16.mxu0 0
      %1482 = vmatpush1.bf16.msra.mxu0 %v1452
      %1483 = vmatprep.subr.bf16.mxu0 0
      %1484 = vmatpush1.bf16.msra.mxu0 %v1453
      %1485 = vmatprep.subr.bf16.mxu0 0
      %1486 = vmatpush1.bf16.msra.mxu0 %v1454
      %1487 = vmatprep.mubr.bf16.mxu0 %v637
      %1488 = vmatmul.mubr.bf16.gmra.mrb[0].mxu0 %v636
      %v1489 = vpop.f32.mrb[0].mxu0
      %v1490 = vadd.f32 0.0, %v1489
      %v1491 = vpop.f32.mrb[0].mxu0
      %v1492 = vpop.f32.mrb[0].mxu0
      %v1493 = vadd.f32 0.0, %v1492
      %v1494 = vpop.f32.mrb[0].mxu0
      %1495 = vmatprep.mubr.bf16.mxu0 %v639
      %1496 = vmatmul.mubr.bf16.gmra.mrb[0].mxu0 %v638
      %v1497 = vpop.f32.mrb[0].mxu0
      %v1498 = vadd.f32 0.0, %v1497
      %v1499 = vpop.f32.mrb[0].mxu0
      %v1500 = vpop.f32.mrb[0].mxu0
      %v1501 = vadd.f32 0.0, %v1500
      %v1502 = vpop.f32.mrb[0].mxu0
      %1503 = vmatprep.mubr.bf16.mxu0 %v641
      %1504 = vmatmul.mubr.bf16.gmra.mrb[0].mxu0 %v640
      %v1505 = vpop.f32.mrb[0].mxu0
      %v1506 = vadd.f32 0.0, %v1505
      %v1507 = vpop.f32.mrb[0].mxu0
      %v1508 = vpop.f32.mrb[0].mxu0
      %v1509 = vadd.f32 0.0, %v1508
      %v1510 = vpop.f32.mrb[0].mxu0
      %1511 = vmatprep.mubr.bf16.mxu0 %v643
      %1512 = vmatmul.mubr.bf16.gmra.mrb[0].mxu0 %v642
      %v1513 = vpop.f32.mrb[0].mxu0
      %v1514 = vadd.f32 0.0, %v1513
      %v1515 = vpop.f32.mrb[0].mxu0
      %v1516 = vpop.f32.mrb[0].mxu0
      %v1517 = vadd.f32 0.0, %v1516
      %v1518 = vpop.f32.mrb[0].mxu0
      %1519 = vmatprep.mubr.bf16.mxu0 %v645
      %1520 = vmatmul.mubr.bf16.gmra.mrb[0].mxu0 %v644
      %v1521 = vpop.f32.mrb[0].mxu0
      %v1522 = vadd.f32 0.0, %v1521
      %v1523 = vpop.f32.mrb[0].mxu0
      %v1524 = vpop.f32.mrb[0].mxu0
      %v1525 = vadd.f32 0.0, %v1524
      %v1526 = vpop.f32.mrb[0].mxu0
      %1527 = vmatprep.mubr.bf16.mxu0 %v647
      %1528 = vmatmul.mubr.bf16.gmra.mrb[0].mxu0 %v646
      %v1529 = vpop.f32.mrb[0].mxu0
      %v1530 = vadd.f32 0.0, %v1529
      %v1531 = vpop.f32.mrb[0].mxu0
      %v1532 = vpop.f32.mrb[0].mxu0
      %v1533 = vadd.f32 0.0, %v1532
      %v1534 = vpop.f32.mrb[0].mxu0
      %1535 = vmatprep.mubr.bf16.mxu0 %v649
      %1536 = vmatmul.mubr.bf16.gmra.mrb[0].mxu0 %v648
      %v1537 = vpop.f32.mrb[0].mxu0
      %v1538 = vadd.f32 0.0, %v1537
      %v1539 = vpop.f32.mrb[0].mxu0
      %v1540 = vpop.f32.mrb[0].mxu0
      %v1541 = vadd.f32 0.0, %v1540
      %v1542 = vpop.f32.mrb[0].mxu0
      %1543 = vmatprep.mubr.bf16.mxu0 %v651
      %1544 = vmatmul.mubr.bf16.gmra.mrb[0].mxu0 %v650
      %v1545 = vpop.f32.mrb[0].mxu0
      %v1546 = vadd.f32 0.0, %v1545
      %v1547 = vpop.f32.mrb[0].mxu0
      %v1548 = vpop.f32.mrb[0].mxu0
      %v1549 = vadd.f32 0.0, %v1548
      %v1550 = vpop.f32.mrb[0].mxu0
      %1551 = vmatprep.mubr.bf16.mxu0 %v653
      %1552 = vmatmul.mubr.bf16.gmra.mrb[0].mxu0 %v652
      %v1553 = vpop.f32.mrb[0].mxu0
      %v1554 = vadd.f32 0.0, %v1553
      %v1555 = vpop.f32.mrb[0].mxu0
      %v1556 = vpop.f32.mrb[0].mxu0
      %v1557 = vadd.f32 0.0, %v1556
      %v1558 = vpop.f32.mrb[0].mxu0
      %1559 = vmatprep.mubr.bf16.mxu0 %v655
      %1560 = vmatmul.mubr.bf16.gmra.mrb[0].mxu0 %v654
      %v1561 = vpop.f32.mrb[0].mxu0
      %v1562 = vadd.f32 0.0, %v1561
      %v1563 = vpop.f32.mrb[0].mxu0
      %v1564 = vpop.f32.mrb[0].mxu0
      %v1565 = vadd.f32 0.0, %v1564
      %v1566 = vpop.f32.mrb[0].mxu0
      %1567 = vmatprep.mubr.bf16.mxu0 %v657
      %1568 = vmatmul.mubr.bf16.gmra.mrb[0].mxu0 %v656
      %v1569 = vpop.f32.mrb[0].mxu0
      %v1570 = vadd.f32 0.0, %v1569
      %v1571 = vpop.f32.mrb[0].mxu0
      %v1572 = vpop.f32.mrb[0].mxu0
      %v1573 = vadd.f32 0.0, %v1572
      %v1574 = vpop.f32.mrb[0].mxu0
      %1575 = vmatprep.mubr.bf16.mxu0 %v659
      %1576 = vmatmul.mubr.bf16.gmra.mrb[0].mxu0 %v658
      %v1577 = vpop.f32.mrb[0].mxu0
      %v1578 = vadd.f32 0.0, %v1577
      %v1579 = vpop.f32.mrb[0].mxu0
      %v1580 = vpop.f32.mrb[0].mxu0
      %v1581 = vadd.f32 0.0, %v1580
      %v1582 = vpop.f32.mrb[0].mxu0
      %1583 = vmatprep.mubr.bf16.mxu0 %v661
      %1584 = vmatmul.mubr.bf16.gmra.mrb[0].mxu0 %v660
      %v1585 = vpop.f32.mrb[0].mxu0
      %v1586 = vadd.f32 0.0, %v1585
      %v1587 = vpop.f32.mrb[0].mxu0
      %v1588 = vpop.f32.mrb[0].mxu0
      %v1589 = vadd.f32 0.0, %v1588
      %v1590 = vpop.f32.mrb[0].mxu0
      %1591 = vmatprep.mubr.bf16.mxu0 %v663
      %1592 = vmatmul.mubr.bf16.gmra.mrb[0].mxu0 %v662
      %v1593 = vpop.f32.mrb[0].mxu0
      %v1594 = vadd.f32 0.0, %v1593
      %v1595 = vpop.f32.mrb[0].mxu0
      %v1596 = vpop.f32.mrb[0].mxu0
      %v1597 = vadd.f32 0.0, %v1596
      %v1598 = vpop.f32.mrb[0].mxu0
      %1599 = vmatprep.mubr.bf16.mxu0 %v665
      %1600 = vmatmul.mubr.bf16.gmra.mrb[0].mxu0 %v664
      %v1601 = vpop.f32.mrb[0].mxu0
      %v1602 = vadd.f32 0.0, %v1601
      %v1603 = vpop.f32.mrb[0].mxu0
      %v1604 = vpop.f32.mrb[0].mxu0
      %v1605 = vadd.f32 0.0, %v1604
      %v1606 = vpop.f32.mrb[0].mxu0
      %1607 = vmatprep.mubr.bf16.mxu0 %v667
      %1608 = vmatmul.mubr.bf16.gmra.mrb[0].mxu0 %v666
      %v1609 = vpop.f32.mrb[0].mxu0
      %v1610 = vadd.f32 0.0, %v1609
      %v1611 = vpop.f32.mrb[0].mxu0
      %v1612 = vpop.f32.mrb[0].mxu0
      %v1613 = vadd.f32 0.0, %v1612
      %v1614 = vpop.f32.mrb[0].mxu0
      %1615 = vdwg.mxu0
      %v1616 = vpack.c.bf16 %v1493, %v1490
      %v1617 = vpack.c.bf16 %v1501, %v1498
      %v1618 = vpack.c.bf16 %v1509, %v1506
      %v1619 = vpack.c.bf16 %v1517, %v1514
      %v1620 = vpack.c.bf16 %v1525, %v1522
      %v1621 = vpack.c.bf16 %v1533, %v1530
      %v1622 = vpack.c.bf16 %v1541, %v1538
      %v1623 = vpack.c.bf16 %v1549, %v1546
      %v1624 = vpack.c.bf16 %v1557, %v1554
      %v1625 = vpack.c.bf16 %v1565, %v1562
      %v1626 = vpack.c.bf16 %v1573, %v1570
      %v1627 = vpack.c.bf16 %v1581, %v1578
      %v1628 = vpack.c.bf16 %v1589, %v1586
      %v1629 = vpack.c.bf16 %v1597, %v1594
      %v1630 = vpack.c.bf16 %v1605, %v1602
      %v1631 = vpack.c.bf16 %v1613, %v1610
      %v1632 = vlaneseq
      %v1633 = vshrl.u32 %v1632, 7
      %v1634 = vsub.s32 0, %v1633
      %v1635 = vrot.slane %v1432, %v1634
      %v1640 = vunpack.c.l.b16 %v1427
      %v1641 = vunpack.c.l.b16 %v1428
      %v1642 = vunpack.c.l.b16 %v1429
      %v1643 = vunpack.c.l.b16 %v1430
      %v1644 = vpack.c.b16 %v1641, %v1640
      %v1645 = vpack.c.b16 %v1643, %v1642
      %v1649 = vsel %vm1161, %v1616, 0
      %v1652 = vsel %vm1161, %v1617, 0
      %v1655 = vsel %vm1161, %v1618, 0
      %v1658 = vsel %vm1161, %v1619, 0
      %v1661 = vsel %vm1161, %v1620, 0
      %v1664 = vsel %vm1161, %v1621, 0
      %v1667 = vsel %vm1161, %v1622, 0
      %v1670 = vsel %vm1161, %v1623, 0
      %v1673 = vsel %vm1161, %v1624, 0
      %v1676 = vsel %vm1161, %v1625, 0
      %v1679 = vsel %vm1161, %v1626, 0
      %v1682 = vsel %vm1161, %v1627, 0
      %v1685 = vsel %vm1161, %v1628, 0
      %v1688 = vsel %vm1161, %v1629, 0
      %v1691 = vsel %vm1161, %v1630, 0
      %v1694 = vsel %vm1161, %v1631, 0
      %1696 = vmatprep.subr.bf16.mxu0 0
      %1697 = vmatpush1.bf16.msra.mxu0 %v1644
      %1698 = vmatprep.subr.bf16.mxu0 0
      %1699 = vmatpush1.bf16.msra.mxu0 %v1645
      %1700 = vmatprep.subr.bf16.mxu0 0
      %1701 = vmatpush1.bf16.msra.mxu0 0
      %1702 = vmatprep.subr.bf16.mxu0 0
      %1703 = vmatpush1.bf16.msra.mxu0 0
      %1704 = vmatprep.subr.bf16.mxu0 0
      %1705 = vmatpush1.bf16.msra.mxu0 0
      %1706 = vmatprep.subr.bf16.mxu0 0
      %1707 = vmatpush1.bf16.msra.mxu0 0
      %1708 = vmatprep.subr.bf16.mxu0 0
      %1709 = vmatpush1.bf16.msra.mxu0 0
      %1710 = vmatprep.subr.bf16.mxu0 0
      %1711 = vmatpush1.bf16.msra.mxu0 0
      %1712 = vmatprep.subr.bf16.mxu0 0
      %1713 = vmatpush1.bf16.msra.mxu0 0
      %1714 = vmatprep.subr.bf16.mxu0 0
      %1715 = vmatpush1.bf16.msra.mxu0 0
      %1716 = vmatprep.subr.bf16.mxu0 0
      %1717 = vmatpush1.bf16.msra.mxu0 0
      %1718 = vmatprep.subr.bf16.mxu0 0
      %1719 = vmatpush1.bf16.msra.mxu0 0
      %1720 = vmatprep.subr.bf16.mxu0 0
      %1721 = vmatpush1.bf16.msra.mxu0 0
      %1722 = vmatprep.subr.bf16.mxu0 0
      %1723 = vmatpush1.bf16.msra.mxu0 0
      %1724 = vmatprep.subr.bf16.mxu0 0
      %1725 = vmatpush1.bf16.msra.mxu0 0
      %1726 = vmatprep.subr.bf16.mxu0 0
      %1727 = vmatpush1.bf16.msra.mxu0 0
      %1728 = vmatprep.mubr.bf16.mxu0 0
      %1729 = vmatmul.mubr.bf16.gmra.mrb[0].mxu0 %v1649
      %v1730 = vpop.f32.mrb[0].mxu0
      %v1731 = vadd.f32 %v1635, %v1730
      %v1732 = vpop.f32.mrb[0].mxu0
      %v1733 = vpop.f32.mrb[0].mxu0
      %v1734 = vadd.f32 %v1635, %v1733
      %v1735 = vpop.f32.mrb[0].mxu0
      %1736 = vmatprep.mubr.bf16.mxu0 0
      %1737 = vmatmul.mubr.bf16.gmra.mrb[0].mxu0 %v1652
      %v1738 = vpop.f32.mrb[0].mxu0
      %v1739 = vadd.f32 %v1635, %v1738
      %v1740 = vpop.f32.mrb[0].mxu0
      %v1741 = vpop.f32.mrb[0].mxu0
      %v1742 = vadd.f32 %v1635, %v1741
      %v1743 = vpop.f32.mrb[0].mxu0
      %1744 = vmatprep.mubr.bf16.mxu0 0
      %1745 = vmatmul.mubr.bf16.gmra.mrb[0].mxu0 %v1655
      %v1746 = vpop.f32.mrb[0].mxu0
      %v1747 = vadd.f32 %v1635, %v1746
      %v1748 = vpop.f32.mrb[0].mxu0
      %v1749 = vpop.f32.mrb[0].mxu0
      %v1750 = vadd.f32 %v1635, %v1749
      %v1751 = vpop.f32.mrb[0].mxu0
      %1752 = vmatprep.mubr.bf16.mxu0 0
      %1753 = vmatmul.mubr.bf16.gmra.mrb[0].mxu0 %v1658
      %v1754 = vpop.f32.mrb[0].mxu0
      %v1755 = vadd.f32 %v1635, %v1754
      %v1756 = vpop.f32.mrb[0].mxu0
      %v1757 = vpop.f32.mrb[0].mxu0
      %v1758 = vadd.f32 %v1635, %v1757
      %v1759 = vpop.f32.mrb[0].mxu0
      %1760 = vmatprep.mubr.bf16.mxu0 0
      %1761 = vmatmul.mubr.bf16.gmra.mrb[0].mxu0 %v1661
      %v1762 = vpop.f32.mrb[0].mxu0
      %v1763 = vadd.f32 %v1635, %v1762
      %v1764 = vpop.f32.mrb[0].mxu0
      %v1765 = vpop.f32.mrb[0].mxu0
      %v1766 = vadd.f32 %v1635, %v1765
      %v1767 = vpop.f32.mrb[0].mxu0
      %1768 = vmatprep.mubr.bf16.mxu0 0
      %1769 = vmatmul.mubr.bf16.gmra.mrb[0].mxu0 %v1664
      %v1770 = vpop.f32.mrb[0].mxu0
      %v1771 = vadd.f32 %v1635, %v1770
      %v1772 = vpop.f32.mrb[0].mxu0
      %v1773 = vpop.f32.mrb[0].mxu0
      %v1774 = vadd.f32 %v1635, %v1773
      %v1775 = vpop.f32.mrb[0].mxu0
      %1776 = vmatprep.mubr.bf16.mxu0 0
      %1777 = vmatmul.mubr.bf16.gmra.mrb[0].mxu0 %v1667
      %v1778 = vpop.f32.mrb[0].mxu0
      %v1779 = vadd.f32 %v1635, %v1778
      %v1780 = vpop.f32.mrb[0].mxu0
      %v1781 = vpop.f32.mrb[0].mxu0
      %v1782 = vadd.f32 %v1635, %v1781
      %v1783 = vpop.f32.mrb[0].mxu0
      %1784 = vmatprep.mubr.bf16.mxu0 0
      %1785 = vmatmul.mubr.bf16.gmra.mrb[0].mxu0 %v1670
      %v1786 = vpop.f32.mrb[0].mxu0
      %v1787 = vadd.f32 %v1635, %v1786
      %v1788 = vpop.f32.mrb[0].mxu0
      %v1789 = vpop.f32.mrb[0].mxu0
      %v1790 = vadd.f32 %v1635, %v1789
      %v1791 = vpop.f32.mrb[0].mxu0
      %1792 = vmatprep.mubr.bf16.mxu0 0
      %1793 = vmatmul.mubr.bf16.gmra.mrb[0].mxu0 %v1673
      %v1794 = vpop.f32.mrb[0].mxu0
      %v1795 = vadd.f32 %v1635, %v1794
      %v1796 = vpop.f32.mrb[0].mxu0
      %v1797 = vpop.f32.mrb[0].mxu0
      %v1798 = vadd.f32 %v1635, %v1797
      %v1799 = vpop.f32.mrb[0].mxu0
      %1800 = vmatprep.mubr.bf16.mxu0 0
      %1801 = vmatmul.mubr.bf16.gmra.mrb[0].mxu0 %v1676
      %v1802 = vpop.f32.mrb[0].mxu0
      %v1803 = vadd.f32 %v1635, %v1802
      %v1804 = vpop.f32.mrb[0].mxu0
      %v1805 = vpop.f32.mrb[0].mxu0
      %v1806 = vadd.f32 %v1635, %v1805
      %v1807 = vpop.f32.mrb[0].mxu0
      %1808 = vmatprep.mubr.bf16.mxu0 0
      %1809 = vmatmul.mubr.bf16.gmra.mrb[0].mxu0 %v1679
      %v1810 = vpop.f32.mrb[0].mxu0
      %v1811 = vadd.f32 %v1635, %v1810
      %v1812 = vpop.f32.mrb[0].mxu0
      %v1813 = vpop.f32.mrb[0].mxu0
      %v1814 = vadd.f32 %v1635, %v1813
      %v1815 = vpop.f32.mrb[0].mxu0
      %1816 = vmatprep.mubr.bf16.mxu0 0
      %1817 = vmatmul.mubr.bf16.gmra.mrb[0].mxu0 %v1682
      %v1818 = vpop.f32.mrb[0].mxu0
      %v1819 = vadd.f32 %v1635, %v1818
      %v1820 = vpop.f32.mrb[0].mxu0
      %v1821 = vpop.f32.mrb[0].mxu0
      %v1822 = vadd.f32 %v1635, %v1821
      %v1823 = vpop.f32.mrb[0].mxu0
      %1824 = vmatprep.mubr.bf16.mxu0 0
      %1825 = vmatmul.mubr.bf16.gmra.mrb[0].mxu0 %v1685
      %v1826 = vpop.f32.mrb[0].mxu0
      %v1827 = vadd.f32 %v1635, %v1826
      %v1828 = vpop.f32.mrb[0].mxu0
      %v1829 = vpop.f32.mrb[0].mxu0
      %v1830 = vadd.f32 %v1635, %v1829
      %v1831 = vpop.f32.mrb[0].mxu0
      %1832 = vmatprep.mubr.bf16.mxu0 0
      %1833 = vmatmul.mubr.bf16.gmra.mrb[0].mxu0 %v1688
      %v1834 = vpop.f32.mrb[0].mxu0
      %v1835 = vadd.f32 %v1635, %v1834
      %v1836 = vpop.f32.mrb[0].mxu0
      %v1837 = vpop.f32.mrb[0].mxu0
      %v1838 = vadd.f32 %v1635, %v1837
      %v1839 = vpop.f32.mrb[0].mxu0
      %1840 = vmatprep.mubr.bf16.mxu0 0
      %1841 = vmatmul.mubr.bf16.gmra.mrb[0].mxu0 %v1691
      %v1842 = vpop.f32.mrb[0].mxu0
      %v1843 = vadd.f32 %v1635, %v1842
      %v1844 = vpop.f32.mrb[0].mxu0
      %v1845 = vpop.f32.mrb[0].mxu0
      %v1846 = vadd.f32 %v1635, %v1845
      %v1847 = vpop.f32.mrb[0].mxu0
      %1848 = vmatprep.mubr.bf16.mxu0 0
      %1849 = vmatmul.mubr.bf16.gmra.mrb[0].mxu0 %v1694
      %v1850 = vpop.f32.mrb[0].mxu0
      %v1851 = vadd.f32 %v1635, %v1850
      %v1852 = vpop.f32.mrb[0].mxu0
      %v1853 = vpop.f32.mrb[0].mxu0
      %v1854 = vadd.f32 %v1635, %v1853
      %v1855 = vpop.f32.mrb[0].mxu0
      %1856 = vdwg.mxu0
      %v1857 = vmax.f32 %v1731, 0.0
      %v1858 = vmax.f32 %v1734, 0.0
      %v1859 = vmax.f32 %v1739, 0.0
      %v1860 = vmax.f32 %v1742, 0.0
      %v1861 = vmax.f32 %v1747, 0.0
      %v1862 = vmax.f32 %v1750, 0.0
      %v1863 = vmax.f32 %v1755, 0.0
      %v1864 = vmax.f32 %v1758, 0.0
      %v1865 = vmax.f32 %v1763, 0.0
      %v1866 = vmax.f32 %v1766, 0.0
      %v1867 = vmax.f32 %v1771, 0.0
      %v1868 = vmax.f32 %v1774, 0.0
      %v1869 = vmax.f32 %v1779, 0.0
      %v1870 = vmax.f32 %v1782, 0.0
      %v1871 = vmax.f32 %v1787, 0.0
      %v1872 = vmax.f32 %v1790, 0.0
      %v1873 = vmax.f32 %v1795, 0.0
      %v1874 = vmax.f32 %v1798, 0.0
      %v1875 = vmax.f32 %v1803, 0.0
      %v1876 = vmax.f32 %v1806, 0.0
      %v1877 = vmax.f32 %v1811, 0.0
      %v1878 = vmax.f32 %v1814, 0.0
      %v1879 = vmax.f32 %v1819, 0.0
      %v1880 = vmax.f32 %v1822, 0.0
      %v1881 = vmax.f32 %v1827, 0.0
      %v1882 = vmax.f32 %v1830, 0.0
      %v1883 = vmax.f32 %v1835, 0.0
      %v1884 = vmax.f32 %v1838, 0.0
      %v1885 = vmax.f32 %v1843, 0.0
      %v1886 = vmax.f32 %v1846, 0.0
      %v1887 = vmax.f32 %v1851, 0.0
      %v1888 = vmax.f32 %v1854, 0.0
      %v1889 = vpack.c.bf16 %v1858, %v1857
      %v1890 = vpack.c.bf16 %v1860, %v1859
      %v1891 = vpack.c.bf16 %v1862, %v1861
      %v1892 = vpack.c.bf16 %v1864, %v1863
      %v1893 = vpack.c.bf16 %v1866, %v1865
      %v1894 = vpack.c.bf16 %v1868, %v1867
      %v1895 = vpack.c.bf16 %v1870, %v1869
      %v1896 = vpack.c.bf16 %v1872, %v1871
      %v1897 = vpack.c.bf16 %v1874, %v1873
      %v1898 = vpack.c.bf16 %v1876, %v1875
      %v1899 = vpack.c.bf16 %v1878, %v1877
      %v1900 = vpack.c.bf16 %v1880, %v1879
      %v1901 = vpack.c.bf16 %v1882, %v1881
      %v1902 = vpack.c.bf16 %v1884, %v1883
      %v1903 = vpack.c.bf16 %v1886, %v1885
      %v1904 = vpack.c.bf16 %v1888, %v1887
      %v1905 = vlaneseq
      %v1906 = vshrl.u32 %v1905, 7
      %v1907 = vsub.s32 0, %v1906
      %v1908 = vrot.slane %v1438, %v1907
      %v1913 = vunpack.c.l.b16 %v1433
      %v1914 = vunpack.c.l.b16 %v1434
      %v1915 = vunpack.c.l.b16 %v1435
      %v1916 = vunpack.c.l.b16 %v1436
      %v1917 = vpack.c.b16 %v1914, %v1913
      %v1918 = vpack.c.b16 %v1916, %v1915
      %v1922 = vsel %vm1161, %v1889, 0
      %v1925 = vsel %vm1161, %v1890, 0
      %v1928 = vsel %vm1161, %v1891, 0
      %v1931 = vsel %vm1161, %v1892, 0
      %v1934 = vsel %vm1161, %v1893, 0
      %v1937 = vsel %vm1161, %v1894, 0
      %v1940 = vsel %vm1161, %v1895, 0
      %v1943 = vsel %vm1161, %v1896, 0
      %v1946 = vsel %vm1161, %v1897, 0
      %v1949 = vsel %vm1161, %v1898, 0
      %v1952 = vsel %vm1161, %v1899, 0
      %v1955 = vsel %vm1161, %v1900, 0
      %v1958 = vsel %vm1161, %v1901, 0
      %v1961 = vsel %vm1161, %v1902, 0
      %v1964 = vsel %vm1161, %v1903, 0
      %v1967 = vsel %vm1161, %v1904, 0
      %1969 = vmatprep.subr.bf16.mxu0 0
      %1970 = vmatpush1.bf16.msra.mxu0 %v1917
      %1971 = vmatprep.subr.bf16.mxu0 0
      %1972 = vmatpush1.bf16.msra.mxu0 %v1918
      %1973 = vmatprep.subr.bf16.mxu0 0
      %1974 = vmatpush1.bf16.msra.mxu0 0
      %1975 = vmatprep.subr.bf16.mxu0 0
      %1976 = vmatpush1.bf16.msra.mxu0 0
      %1977 = vmatprep.subr.bf16.mxu0 0
      %1978 = vmatpush1.bf16.msra.mxu0 0
      %1979 = vmatprep.subr.bf16.mxu0 0
      %1980 = vmatpush1.bf16.msra.mxu0 0
      %1981 = vmatprep.subr.bf16.mxu0 0
      %1982 = vmatpush1.bf16.msra.mxu0 0
      %1983 = vmatprep.subr.bf16.mxu0 0
      %1984 = vmatpush1.bf16.msra.mxu0 0
      %1985 = vmatprep.subr.bf16.mxu0 0
      %1986 = vmatpush1.bf16.msra.mxu0 0
      %1987 = vmatprep.subr.bf16.mxu0 0
      %1988 = vmatpush1.bf16.msra.mxu0 0
      %1989 = vmatprep.subr.bf16.mxu0 0
      %1990 = vmatpush1.bf16.msra.mxu0 0
      %1991 = vmatprep.subr.bf16.mxu0 0
      %1992 = vmatpush1.bf16.msra.mxu0 0
      %1993 = vmatprep.subr.bf16.mxu0 0
      %1994 = vmatpush1.bf16.msra.mxu0 0
      %1995 = vmatprep.subr.bf16.mxu0 0
      %1996 = vmatpush1.bf16.msra.mxu0 0
      %1997 = vmatprep.subr.bf16.mxu0 0
      %1998 = vmatpush1.bf16.msra.mxu0 0
      %1999 = vmatprep.subr.bf16.mxu0 0
      %2000 = vmatpush1.bf16.msra.mxu0 0
      %2001 = vmatprep.mubr.bf16.mxu0 0
      %2002 = vmatmul.mubr.bf16.gmra.mrb[0].mxu0 %v1922
      %v2003 = vpop.f32.mrb[0].mxu0
      %v2004 = vadd.f32 %v1908, %v2003
      %v2005 = vpop.f32.mrb[0].mxu0
      %v2006 = vpop.f32.mrb[0].mxu0
      %v2007 = vadd.f32 %v1908, %v2006
      %v2008 = vpop.f32.mrb[0].mxu0
      %2009 = vmatprep.mubr.bf16.mxu0 0
      %2010 = vmatmul.mubr.bf16.gmra.mrb[0].mxu0 %v1925
      %v2011 = vpop.f32.mrb[0].mxu0
      %v2012 = vadd.f32 %v1908, %v2011
      %v2013 = vpop.f32.mrb[0].mxu0
      %v2014 = vpop.f32.mrb[0].mxu0
      %v2015 = vadd.f32 %v1908, %v2014
      %v2016 = vpop.f32.mrb[0].mxu0
      %2017 = vmatprep.mubr.bf16.mxu0 0
      %2018 = vmatmul.mubr.bf16.gmra.mrb[0].mxu0 %v1928
      %v2019 = vpop.f32.mrb[0].mxu0
      %v2020 = vadd.f32 %v1908, %v2019
      %v2021 = vpop.f32.mrb[0].mxu0
      %v2022 = vpop.f32.mrb[0].mxu0
      %v2023 = vadd.f32 %v1908, %v2022
      %v2024 = vpop.f32.mrb[0].mxu0
      %2025 = vmatprep.mubr.bf16.mxu0 0
      %2026 = vmatmul.mubr.bf16.gmra.mrb[0].mxu0 %v1931
      %v2027 = vpop.f32.mrb[0].mxu0
      %v2028 = vadd.f32 %v1908, %v2027
      %v2029 = vpop.f32.mrb[0].mxu0
      %v2030 = vpop.f32.mrb[0].mxu0
      %v2031 = vadd.f32 %v1908, %v2030
      %v2032 = vpop.f32.mrb[0].mxu0
      %2033 = vmatprep.mubr.bf16.mxu0 0
      %2034 = vmatmul.mubr.bf16.gmra.mrb[0].mxu0 %v1934
      %v2035 = vpop.f32.mrb[0].mxu0
      %v2036 = vadd.f32 %v1908, %v2035
      %v2037 = vpop.f32.mrb[0].mxu0
      %v2038 = vpop.f32.mrb[0].mxu0
      %v2039 = vadd.f32 %v1908, %v2038
      %v2040 = vpop.f32.mrb[0].mxu0
      %2041 = vmatprep.mubr.bf16.mxu0 0
      %2042 = vmatmul.mubr.bf16.gmra.mrb[0].mxu0 %v1937
      %v2043 = vpop.f32.mrb[0].mxu0
      %v2044 = vadd.f32 %v1908, %v2043
      %v2045 = vpop.f32.mrb[0].mxu0
      %v2046 = vpop.f32.mrb[0].mxu0
      %v2047 = vadd.f32 %v1908, %v2046
      %v2048 = vpop.f32.mrb[0].mxu0
      %2049 = vmatprep.mubr.bf16.mxu0 0
      %2050 = vmatmul.mubr.bf16.gmra.mrb[0].mxu0 %v1940
      %v2051 = vpop.f32.mrb[0].mxu0
      %v2052 = vadd.f32 %v1908, %v2051
      %v2053 = vpop.f32.mrb[0].mxu0
      %v2054 = vpop.f32.mrb[0].mxu0
      %v2055 = vadd.f32 %v1908, %v2054
      %v2056 = vpop.f32.mrb[0].mxu0
      %2057 = vmatprep.mubr.bf16.mxu0 0
      %2058 = vmatmul.mubr.bf16.gmra.mrb[0].mxu0 %v1943
      %v2059 = vpop.f32.mrb[0].mxu0
      %v2060 = vadd.f32 %v1908, %v2059
      %v2061 = vpop.f32.mrb[0].mxu0
      %v2062 = vpop.f32.mrb[0].mxu0
      %v2063 = vadd.f32 %v1908, %v2062
      %v2064 = vpop.f32.mrb[0].mxu0
      %2065 = vmatprep.mubr.bf16.mxu0 0
      %2066 = vmatmul.mubr.bf16.gmra.mrb[0].mxu0 %v1946
      %v2067 = vpop.f32.mrb[0].mxu0
      %v2068 = vadd.f32 %v1908, %v2067
      %v2069 = vpop.f32.mrb[0].mxu0
      %v2070 = vpop.f32.mrb[0].mxu0
      %v2071 = vadd.f32 %v1908, %v2070
      %v2072 = vpop.f32.mrb[0].mxu0
      %2073 = vmatprep.mubr.bf16.mxu0 0
      %2074 = vmatmul.mubr.bf16.gmra.mrb[0].mxu0 %v1949
      %v2075 = vpop.f32.mrb[0].mxu0
      %v2076 = vadd.f32 %v1908, %v2075
      %v2077 = vpop.f32.mrb[0].mxu0
      %v2078 = vpop.f32.mrb[0].mxu0
      %v2079 = vadd.f32 %v1908, %v2078
      %v2080 = vpop.f32.mrb[0].mxu0
      %2081 = vmatprep.mubr.bf16.mxu0 0
      %2082 = vmatmul.mubr.bf16.gmra.mrb[0].mxu0 %v1952
      %v2083 = vpop.f32.mrb[0].mxu0
      %v2084 = vadd.f32 %v1908, %v2083
      %v2085 = vpop.f32.mrb[0].mxu0
      %v2086 = vpop.f32.mrb[0].mxu0
      %v2087 = vadd.f32 %v1908, %v2086
      %v2088 = vpop.f32.mrb[0].mxu0
      %2089 = vmatprep.mubr.bf16.mxu0 0
      %2090 = vmatmul.mubr.bf16.gmra.mrb[0].mxu0 %v1955
      %v2091 = vpop.f32.mrb[0].mxu0
      %v2092 = vadd.f32 %v1908, %v2091
      %v2093 = vpop.f32.mrb[0].mxu0
      %v2094 = vpop.f32.mrb[0].mxu0
      %v2095 = vadd.f32 %v1908, %v2094
      %v2096 = vpop.f32.mrb[0].mxu0
      %2097 = vmatprep.mubr.bf16.mxu0 0
      %2098 = vmatmul.mubr.bf16.gmra.mrb[0].mxu0 %v1958
      %v2099 = vpop.f32.mrb[0].mxu0
      %v2100 = vadd.f32 %v1908, %v2099
      %v2101 = vpop.f32.mrb[0].mxu0
      %v2102 = vpop.f32.mrb[0].mxu0
      %v2103 = vadd.f32 %v1908, %v2102
      %v2104 = vpop.f32.mrb[0].mxu0
      %2105 = vmatprep.mubr.bf16.mxu0 0
      %2106 = vmatmul.mubr.bf16.gmra.mrb[0].mxu0 %v1961
      %v2107 = vpop.f32.mrb[0].mxu0
      %v2108 = vadd.f32 %v1908, %v2107
      %v2109 = vpop.f32.mrb[0].mxu0
      %v2110 = vpop.f32.mrb[0].mxu0
      %v2111 = vadd.f32 %v1908, %v2110
      %v2112 = vpop.f32.mrb[0].mxu0
      %2113 = vmatprep.mubr.bf16.mxu0 0
      %2114 = vmatmul.mubr.bf16.gmra.mrb[0].mxu0 %v1964
      %v2115 = vpop.f32.mrb[0].mxu0
      %v2116 = vadd.f32 %v1908, %v2115
      %v2117 = vpop.f32.mrb[0].mxu0
      %v2118 = vpop.f32.mrb[0].mxu0
      %v2119 = vadd.f32 %v1908, %v2118
      %v2120 = vpop.f32.mrb[0].mxu0
      %2121 = vmatprep.mubr.bf16.mxu0 0
      %2122 = vmatmul.mubr.bf16.gmra.mrb[0].mxu0 %v1967
      %v2123 = vpop.f32.mrb[0].mxu0
      %v2124 = vadd.f32 %v1908, %v2123
      %v2125 = vpop.f32.mrb[0].mxu0
      %v2126 = vpop.f32.mrb[0].mxu0
      %v2127 = vadd.f32 %v1908, %v2126
      %v2128 = vpop.f32.mrb[0].mxu0
      %2129 = vdwg.mxu0
      %v2130 = vmax.f32 %v2004, 0.0
      %v2131 = vmax.f32 %v2007, 0.0
      %v2132 = vmax.f32 %v2012, 0.0
      %v2133 = vmax.f32 %v2015, 0.0
      %v2134 = vmax.f32 %v2020, 0.0
      %v2135 = vmax.f32 %v2023, 0.0
      %v2136 = vmax.f32 %v2028, 0.0
      %v2137 = vmax.f32 %v2031, 0.0
      %v2138 = vmax.f32 %v2036, 0.0
      %v2139 = vmax.f32 %v2039, 0.0
      %v2140 = vmax.f32 %v2044, 0.0
      %v2141 = vmax.f32 %v2047, 0.0
      %v2142 = vmax.f32 %v2052, 0.0
      %v2143 = vmax.f32 %v2055, 0.0
      %v2144 = vmax.f32 %v2060, 0.0
      %v2145 = vmax.f32 %v2063, 0.0
      %v2146 = vmax.f32 %v2068, 0.0
      %v2147 = vmax.f32 %v2071, 0.0
      %v2148 = vmax.f32 %v2076, 0.0
      %v2149 = vmax.f32 %v2079, 0.0
      %v2150 = vmax.f32 %v2084, 0.0
      %v2151 = vmax.f32 %v2087, 0.0
      %v2152 = vmax.f32 %v2092, 0.0
      %v2153 = vmax.f32 %v2095, 0.0
      %v2154 = vmax.f32 %v2100, 0.0
      %v2155 = vmax.f32 %v2103, 0.0
      %v2156 = vmax.f32 %v2108, 0.0
      %v2157 = vmax.f32 %v2111, 0.0
      %v2158 = vmax.f32 %v2116, 0.0
      %v2159 = vmax.f32 %v2119, 0.0
      %v2160 = vmax.f32 %v2124, 0.0
      %v2161 = vmax.f32 %v2127, 0.0
      %v2162 = vadd.f32 %v2130, %v2134
      %v2163 = vadd.f32 %v2131, %v2135
      %v2164 = vadd.f32 %v2132, %v2136
      %v2165 = vadd.f32 %v2133, %v2137
      %v2166 = vadd.f32 %v2162, %v2138
      %v2167 = vadd.f32 %v2163, %v2139
      %v2168 = vadd.f32 %v2164, %v2140
      %v2169 = vadd.f32 %v2165, %v2141
      %v2170 = vadd.f32 %v2166, %v2142
      %v2171 = vadd.f32 %v2167, %v2143
      %v2172 = vadd.f32 %v2168, %v2144
      %v2173 = vadd.f32 %v2169, %v2145
      %v2174 = vadd.f32 %v2146, %v2150
      %v2175 = vadd.f32 %v2147, %v2151
      %v2176 = vadd.f32 %v2148, %v2152
      %v2177 = vadd.f32 %v2149, %v2153
      %v2178 = vadd.f32 %v2174, %v2154
      %v2179 = vadd.f32 %v2175, %v2155
      %v2180 = vadd.f32 %v2176, %v2156
      %v2181 = vadd.f32 %v2177, %v2157
      %v2182 = vadd.f32 %v2178, %v2158
      %v2183 = vadd.f32 %v2179, %v2159
      %v2184 = vadd.f32 %v2180, %v2160
      %v2185 = vadd.f32 %v2181, %v2161
      %2190 = vrot.lane.b32.xlu0 %v1411, 16
      %v2191 = vpop.permute.xlu0 %2190
      %2192 = vrot.lane.b32.xlu0 %v1412, 16
      %v2193 = vpop.permute.xlu0 %2192
      %2194 = vrot.lane.b32.xlu0 %v1413, 16
      %v2195 = vpop.permute.xlu0 %2194
      %2196 = vrot.lane.b32.xlu0 %v1414, 16
      %v2197 = vpop.permute.xlu0 %2196
      %2206 = vrot.lane.b32.xlu0 %v2170, 48
      %v2207 = vpop.permute.xlu0 %2206
      %2208 = vrot.lane.b32.xlu0 %v2171, 48
      %v2209 = vpop.permute.xlu0 %2208
      %2210 = vrot.lane.b32.xlu0 %v2172, 48
      %v2211 = vpop.permute.xlu0 %2210
      %2212 = vrot.lane.b32.xlu0 %v2173, 48
      %v2213 = vpop.permute.xlu0 %2212
      %v2218 = vsel %vm887, %v498, %v2191
      %v2219 = vsel %vm887, %v499, %v2193
      %v2220 = vsel %vm887, %v500, %v2195
      %v2221 = vsel %vm887, %v501, %v2197
      %vm2222 = vcmask 392192
      %v2223 = vsel %vm2222, %v2218, %v2207
      %v2224 = vsel %vm2222, %v2219, %v2209
      %v2225 = vsel %vm2222, %v2220, %v2211
      %v2226 = vsel %vm2222, %v2221, %v2213
      %2231 = vrot.lane.b32.xlu0 %v1423, 16
      %v2232 = vpop.permute.xlu0 %2231
      %2233 = vrot.lane.b32.xlu0 %v1424, 16
      %v2234 = vpop.permute.xlu0 %2233
      %2235 = vrot.lane.b32.xlu0 %v1425, 16
      %v2236 = vpop.permute.xlu0 %2235
      %2237 = vrot.lane.b32.xlu0 %v1426, 16
      %v2238 = vpop.permute.xlu0 %2237
      %2247 = vrot.lane.b32.xlu0 %v2182, 48
      %v2248 = vpop.permute.xlu0 %2247
      %2249 = vrot.lane.b32.xlu0 %v2183, 48
      %v2250 = vpop.permute.xlu0 %2249
      %2251 = vrot.lane.b32.xlu0 %v2184, 48
      %v2252 = vpop.permute.xlu0 %2251
      %2253 = vrot.lane.b32.xlu0 %v2185, 48
      %v2254 = vpop.permute.xlu0 %2253
      %v2259 = vsel %vm887, %v510, %v2232
      %v2260 = vsel %vm887, %v511, %v2234
      %v2261 = vsel %vm887, %v512, %v2236
      %v2262 = vsel %vm887, %v513, %v2238
      %v2263 = vsel %vm2222, %v2259, %v2248
      %v2264 = vsel %vm2222, %v2260, %v2250
      %v2265 = vsel %vm2222, %v2261, %v2252
      %v2266 = vsel %vm2222, %v2262, %v2254
      %v2267 = vld [vmem:[%s4 + $0x8] sm:$0xf]
      %v2268 = vld [vmem:[%s4 + $0xc] sm:$0xf]
      %v2269 = vld [vmem:[%s4 + $0x10] sm:$0xf]
      %v2270 = vld [vmem:[%s4 + $0x14] sm:$0xf]
      %v2271 = vld [vmem:[%s4 + $0x18] sm:$0xf]
      %v2272 = vld [vmem:[%s4 + $0x1c] sm:$0xf]
      %v2273 = vld [vmem:[%s4 + $0x20] sm:$0xf]
      %v2274 = vld [vmem:[%s4 + $0x24] sm:$0xf]
      %v2275 = vld [vmem:[%s4 + $0x28] sm:$0xf]
      %v2276 = vld [vmem:[%s4 + $0x2c] sm:$0xf]
      %v2277 = vld [vmem:[%s4] sm:$0x1]
      %v2278 = vunpack.c.l.bf16 %v2277
      %v2279 = vpack.c.bf16 %v2224, %v2223
      %v2280 = vpack.c.bf16 %v2226, %v2225
      %v2281 = vpack.c.bf16 %v2264, %v2263
      %v2282 = vpack.c.bf16 %v2266, %v2265
      %v2283 = vlaneseq
      %v2284 = vshrl.u32 %v2283, 7
      %v2285 = vsub.s32 0, %v2284
      %v2286 = vrot.slane %v2278, %v2285
      %v2297 = vunpack.c.l.b16 %v2267
      %v2298 = vunpack.c.l.b16 %v2268
      %v2299 = vunpack.c.l.b16 %v2269
      %v2300 = vunpack.c.l.b16 %v2270
      %v2301 = vunpack.c.l.b16 %v2271
      %v2302 = vunpack.c.l.b16 %v2272
      %v2303 = vunpack.c.l.b16 %v2273
      %v2304 = vunpack.c.l.b16 %v2274
      %v2305 = vunpack.c.l.b16 %v2275
      %v2306 = vunpack.c.l.b16 %v2276
      %v2307 = vpack.c.b16 %v2298, %v2297
      %v2308 = vpack.c.b16 %v2300, %v2299
      %v2309 = vpack.c.b16 %v2302, %v2301
      %v2310 = vpack.c.b16 %v2304, %v2303
      %v2311 = vpack.c.b16 %v2306, %v2305
      %vm2317 = vcmask 654336
      %v2319 = vsel %vm2317, %v2279, 0
      %v2322 = vsel %vm2317, %v2280, 0
      %v2325 = vsel %vm2317, %v2281, 0
      %v2328 = vsel %vm2317, %v2282, 0
      %2330 = vmatprep.subr.bf16.mxu0 0
      %2331 = vmatpush1.bf16.msra.mxu0 %v2307
      %2332 = vmatprep.subr.bf16.mxu0 0
      %2333 = vmatpush1.bf16.msra.mxu0 %v2308
      %2334 = vmatprep.subr.bf16.mxu0 0
      %2335 = vmatpush1.bf16.msra.mxu0 %v2309
      %2336 = vmatprep.subr.bf16.mxu0 0
      %2337 = vmatpush1.bf16.msra.mxu0 %v2310
      %2338 = vmatprep.subr.bf16.mxu0 0
      %2339 = vmatpush1.bf16.msra.mxu0 %v2311
      %2340 = vmatprep.subr.bf16.mxu0 0
      %2341 = vmatpush1.bf16.msra.mxu0 0
      %2342 = vmatprep.subr.bf16.mxu0 0
      %2343 = vmatpush1.bf16.msra.mxu0 0
      %2344 = vmatprep.subr.bf16.mxu0 0
      %2345 = vmatpush1.bf16.msra.mxu0 0
      %2346 = vmatprep.subr.bf16.mxu0 0
      %2347 = vmatpush1.bf16.msra.mxu0 0
      %2348 = vmatprep.subr.bf16.mxu0 0
      %2349 = vmatpush1.bf16.msra.mxu0 0
      %2350 = vmatprep.subr.bf16.mxu0 0
      %2351 = vmatpush1.bf16.msra.mxu0 0
      %2352 = vmatprep.subr.bf16.mxu0 0
      %2353 = vmatpush1.bf16.msra.mxu0 0
      %2354 = vmatprep.subr.bf16.mxu0 0
      %2355 = vmatpush1.bf16.msra.mxu0 0
      %2356 = vmatprep.subr.bf16.mxu0 0
      %2357 = vmatpush1.bf16.msra.mxu0 0
      %2358 = vmatprep.subr.bf16.mxu0 0
      %2359 = vmatpush1.bf16.msra.mxu0 0
      %2360 = vmatprep.subr.bf16.mxu0 0
      %2361 = vmatpush1.bf16.msra.mxu0 0
      %2362 = vmatprep.mubr.bf16.mxu0 0
      %2363 = vmatmul.mubr.bf16.gmra.mrb[0].mxu0 %v2319
      %v2364 = vpop.f32.mrb[0].mxu0
      %v2365 = vadd.f32 %v2286, %v2364
      %v2366 = vpop.f32.mrb[0].mxu0
      %v2367 = vpop.f32.mrb[0].mxu0
      %v2368 = vadd.f32 %v2286, %v2367
      %v2369 = vpop.f32.mrb[0].mxu0
      %2370 = vmatprep.mubr.bf16.mxu0 0
      %2371 = vmatmul.mubr.bf16.gmra.mrb[0].mxu0 %v2322
      %v2372 = vpop.f32.mrb[0].mxu0
      %v2373 = vadd.f32 %v2286, %v2372
      %v2374 = vpop.f32.mrb[0].mxu0
      %v2375 = vpop.f32.mrb[0].mxu0
      %v2376 = vadd.f32 %v2286, %v2375
      %v2377 = vpop.f32.mrb[0].mxu0
      %2378 = vmatprep.mubr.bf16.mxu0 0
      %2379 = vmatmul.mubr.bf16.gmra.mrb[0].mxu0 %v2325
      %v2380 = vpop.f32.mrb[0].mxu0
      %v2381 = vadd.f32 %v2286, %v2380
      %v2382 = vpop.f32.mrb[0].mxu0
      %v2383 = vpop.f32.mrb[0].mxu0
      %v2384 = vadd.f32 %v2286, %v2383
      %v2385 = vpop.f32.mrb[0].mxu0
      %2386 = vmatprep.mubr.bf16.mxu0 0
      %2387 = vmatmul.mubr.bf16.gmra.mrb[0].mxu0 %v2328
      %v2388 = vpop.f32.mrb[0].mxu0
      %v2389 = vadd.f32 %v2286, %v2388
      %v2390 = vpop.f32.mrb[0].mxu0
      %v2391 = vpop.f32.mrb[0].mxu0
      %v2392 = vadd.f32 %v2286, %v2391
      %v2393 = vpop.f32.mrb[0].mxu0
      %2394 = vdwg.mxu0
      %2395 = vmax.xlane.f32.xlu0 %v2365
      %v2396 = vpop.xlane.xlu0 %2395
      %2397 = vmax.xlane.f32.xlu0 %v2368
      %v2398 = vpop.xlane.xlu0 %2397
      %2399 = vmax.xlane.f32.xlu0 %v2373
      %v2400 = vpop.xlane.xlu0 %2399
      %2401 = vmax.xlane.f32.xlu0 %v2376
      %v2402 = vpop.xlane.xlu0 %2401
      %2403 = vmax.xlane.f32.xlu0 %v2381
      %v2404 = vpop.xlane.xlu0 %2403
      %2405 = vmax.xlane.f32.xlu0 %v2384
      %v2406 = vpop.xlane.xlu0 %2405
      %2407 = vmax.xlane.f32.xlu0 %v2389
      %v2408 = vpop.xlane.xlu0 %2407
      %2409 = vmax.xlane.f32.xlu0 %v2392
      %v2410 = vpop.xlane.xlu0 %2409
      %v2411 = vsub.f32 %v2365, %v2396
      %v2412 = vsub.f32 %v2368, %v2398
      %v2413 = vsub.f32 %v2373, %v2400
      %v2414 = vsub.f32 %v2376, %v2402
      %v2415 = vsub.f32 %v2381, %v2404
      %v2416 = vsub.f32 %v2384, %v2406
      %v2417 = vsub.f32 %v2389, %v2408
      %v2418 = vsub.f32 %v2392, %v2410
      %v2419 = vmul.f32 %v2411, 1.442695
      %v2420 = vpow.pop %v2419
      %v2421 = vmul.f32 %v2412, 1.442695
      %v2422 = vpow.pop %v2421
      %v2423 = vmul.f32 %v2413, 1.442695
      %v2424 = vpow.pop %v2423
      %v2425 = vmul.f32 %v2414, 1.442695
      %v2426 = vpow.pop %v2425
      %v2427 = vmul.f32 %v2415, 1.442695
      %v2428 = vpow.pop %v2427
      %v2429 = vmul.f32 %v2416, 1.442695
      %v2430 = vpow.pop %v2429
      %v2431 = vmul.f32 %v2417, 1.442695
      %v2432 = vpow.pop %v2431
      %v2433 = vmul.f32 %v2418, 1.442695
      %v2434 = vpow.pop %v2433
      %2435 = vadd.xlane.f32.xlu0 %v2420
      %v2436 = vpop.xlane.xlu0 %2435
      %2437 = vadd.xlane.f32.xlu0 %v2422
      %v2438 = vpop.xlane.xlu0 %2437
      %2439 = vadd.xlane.f32.xlu0 %v2424
      %v2440 = vpop.xlane.xlu0 %2439
      %2441 = vadd.xlane.f32.xlu0 %v2426
      %v2442 = vpop.xlane.xlu0 %2441
      %2443 = vadd.xlane.f32.xlu0 %v2428
      %v2444 = vpop.xlane.xlu0 %2443
      %2445 = vadd.xlane.f32.xlu0 %v2430
      %v2446 = vpop.xlane.xlu0 %2445
      %2447 = vadd.xlane.f32.xlu0 %v2432
      %v2448 = vpop.xlane.xlu0 %2447
      %2449 = vadd.xlane.f32.xlu0 %v2434
      %v2450 = vpop.xlane.xlu0 %2449
      %v2451 = vlog2.pop %v2436
      %v2452 = vmul.f32 %v2451, 0.6931472
      %v2453 = vlog2.pop %v2438
      %v2454 = vmul.f32 %v2453, 0.6931472
      %v2455 = vlog2.pop %v2440
      %v2456 = vmul.f32 %v2455, 0.6931472
      %v2457 = vlog2.pop %v2442
      %v2458 = vmul.f32 %v2457, 0.6931472
      %v2459 = vlog2.pop %v2444
      %v2460 = vmul.f32 %v2459, 0.6931472
      %v2461 = vlog2.pop %v2446
      %v2462 = vmul.f32 %v2461, 0.6931472
      %v2463 = vlog2.pop %v2448
      %v2464 = vmul.f32 %v2463, 0.6931472
      %v2465 = vlog2.pop %v2450
      %v2466 = vmul.f32 %v2465, 0.6931472
      %v2467 = vsub.f32 %v2411, %v2452
      %v2468 = vsub.f32 %v2412, %v2454
      %v2469 = vsub.f32 %v2413, %v2456
      %v2470 = vsub.f32 %v2414, %v2458
      %v2471 = vsub.f32 %v2415, %v2460
      %v2472 = vsub.f32 %v2416, %v2462
      %v2473 = vsub.f32 %v2417, %v2464
      %v2474 = vsub.f32 %v2418, %v2466
      %2475 = vst [vmem:[%s264] sm:$0xff] %v2467
      %2476 = vst [vmem:[%s264 + $0x8] sm:$0xff] %v2468
      %2477 = vst [vmem:[%s264 + $0x10] sm:$0xff] %v2469
      %2478 = vst [vmem:[%s264 + $0x18] sm:$0xff] %v2470
      %s2479 = scalar_lea.vmem %s264, 32
      %2480 = vst [vmem:[%s2479] sm:$0xff] %v2471
      %2481 = vst [vmem:[%s2479 + $0x8] sm:$0xff] %v2472
      %2482 = vst [vmem:[%s2479 + $0x10] sm:$0xff] %v2473
      %2483 = vst [vmem:[%s2479 + $0x18] sm:$0xff] %v2474
      %p2484 = scmp.lt.s32.totalorder %s16, 1
      %s2485 = scalar_select %p2484, %s16, 1
      %s2486 = smul.addr %s2485, 8
      %s2487 = smul.addr %s2486, 8
      %s2488 = scalar_lea.vmem %s5, %s2487
      // Predicated region
      $region41: #{dropgin_forward.1} parent=39 // pred_check
        %p2489 = pneg %p154
      $region42: #{dropgin_forward.1} parent=39 // pred_check_branch
        %2491 = sbr.rel (%p2489) target = $region44
      $region43: #{dropgin_forward.1} parent=39 // pred_region
        _
      $region44: #{dropgin_forward.1} parent=39 // pred_fallthru
        _
    $region40: #{dropgin_forward.1} parent=5 // pred_fallthru
      _
    %p2492 = scmp.le.s32.totalorder 2, %s11
    // Predicated region
    $region45: #{dropgin_forward.1} parent=5 // pred_check
      %p2493 = pneg %p2492
    $region46: #{dropgin_forward.1} parent=5 // pred_check_branch
      %2495 = sbr.rel (%p2493) target = $region48
    $region47: #{dropgin_forward.1} parent=5 // pred_region
      %s2496 = ssub.s32 %s11, 2
      // Predicated region
      $region49: #{dropgin_forward.1} parent=47 // pred_check
        %p2497 = pneg %p160
      $region50: #{dropgin_forward.1} parent=47 // pred_check_branch
        %2499 = sbr.rel (%p2497) target = $region52
      $region51: #{dropgin_forward.1} parent=47 // pred_region
        %p2500 = scmp.lt.s32.totalorder %s17, 1
        %s2501 = scalar_select %p2500, %s17, 1
        %s2502 = smul.addr %s2501, 8
        %s2503 = smul.addr %s2502, 8
        %s2504 = scalar_lea.vmem %s5, %s2503
      $region52: #{dropgin_forward.1} parent=47 // pred_fallthru
        _
    $region48: #{dropgin_forward.1} parent=5 // pred_fallthru
      _
  $region6: #{dropgin_forward.1} parent=0 // loop_footer
    %s15 = sadd.s32 1, %s11
  $region7: #{dropgin_forward.1} parent=0 // loop_footer_branch
    %10 = sbr.rel target = $region3
  $region8: #{dropgin_forward.1} parent=0 // loop_exit
    _

</llo_original>
